<compile_context>
chip_gen: v5e
topology: v5e:2x2
jax: 0.10.0
libtpu: 0.0.40
codegen_flags: <defaults>
</compile_context>

<pallas_src>
import jax
import jax.numpy as jnp
from jax.experimental import pallas as pl
from jax.experimental.pallas import tpu as pltpu

HIDDEN = 256
TM_MAX = 1024   # largest batch tile (keeps VMEM use far below the scoped default on all chips)


def _round_up(n, m):
    return ((n + m - 1) // m) * m


def _cdiv(a, b):
    return -(-a // b)


def _dqn_mlp_kernel(x_ref,
                    w1_ref, b1_ref,
                    w2_ref, b2_ref,
                    w3_ref, b3_ref,
                    w4_ref, b4_ref,
                    w5_ref, b5_ref,
                    o_ref):
    # Layer 1: (TM, S) bf16 @ (S, H) bf16 -> f32 acc, bias + ReLU in f32, recast to bf16.
    h = jnp.dot(x_ref[...], w1_ref[...], preferred_element_type=jnp.float32) + b1_ref[...]
    h = jnp.maximum(h, 0.0).astype(jnp.bfloat16)

    # Layer 2
    h = jnp.dot(h, w2_ref[...], preferred_element_type=jnp.float32) + b2_ref[...]
    h = jnp.maximum(h, 0.0).astype(jnp.bfloat16)

    # Layer 3
    h = jnp.dot(h, w3_ref[...], preferred_element_type=jnp.float32) + b3_ref[...]
    h = jnp.maximum(h, 0.0).astype(jnp.bfloat16)

    # Layer 4
    h = jnp.dot(h, w4_ref[...], preferred_element_type=jnp.float32) + b4_ref[...]
    h = jnp.maximum(h, 0.0).astype(jnp.bfloat16)

    # Output layer (no activation) — lane-padded to 128 outputs, stored as bf16.
    out = jnp.dot(h, w5_ref[...], preferred_element_type=jnp.float32) + b5_ref[...]
    o_ref[...] = out.astype(o_ref.dtype)


def dqn_forward(x, params):
    """x: (batch, state_size) float32.

    params: list of (W, b) with W (in, out) float32, b (1, out) float32
    (weights are pre-transposed relative to PyTorch so y = x @ W + b).
    Returns (batch, action_size) float32 Q-values.
    """
    B, S = x.shape
    A = params[-1][0].shape[1]
    A_pad = _round_up(max(A, 128), 128)   # lane-dense output slab

    # Tile selection: >= 2 steps (even) for v7x megacore occupancy, large TM to amortize
    # per-step overhead, and TM chosen from the step count to minimize padding waste.
    n_steps = max(2, _cdiv(B, TM_MAX))
    if n_steps % 2:
        n_steps += 1
    TM = _round_up(_cdiv(B, n_steps), 8)
    B_pad = TM * n_steps

    # x streamed as bf16 (halves x DMA; no in-kernel cast needed).
    x_p = x.astype(jnp.bfloat16)
    if B_pad != B:
        x_p = jnp.pad(x_p, ((0, B_pad - B), (0, 0)))

    # Weights bf16 (bf16-native MXU, half the resident footprint); biases stay f32 for
    # the f32 epilogue. Last layer zero-padded to A_pad output lanes.
    flat_args = [x_p]
    n_layers = len(params)
    for i, (w, b) in enumerate(params):
        w = w.astype(jnp.bfloat16)
        b = b.astype(jnp.float32)
        if i == n_layers - 1 and A_pad != A:
            w = jnp.pad(w, ((0, 0), (0, A_pad - A)))
            b = jnp.pad(b, ((0, 0), (0, A_pad - A)))
        flat_args.append(w)
        flat_args.append(b)

    # BlockSpecs: x/out tiled over batch; weights/biases resident (constant index_map).
    in_specs = [pl.BlockSpec((TM, S), lambda i: (i, 0))]
    for arg in flat_args[1:]:
        in_specs.append(pl.BlockSpec(arg.shape, lambda i: (0, 0)))
    out_specs = pl.BlockSpec((TM, A_pad), lambda i: (i, 0))

    out = pl.pallas_call(
        _dqn_mlp_kernel,
        out_shape=jax.ShapeDtypeStruct((B_pad, A_pad), jnp.bfloat16),
        grid=(n_steps,),
        in_specs=in_specs,
        out_specs=out_specs,
        compiler_params=pltpu.CompilerParams(
            dimension_semantics=("parallel",)),
    )(*flat_args)

    return out[:B, :A].astype(jnp.float32)


def init_params(key, state_size, action_size):
    """Deterministic init of the 5 Linear layers (weights stored as (in, out))."""
    dims = [(state_size, HIDDEN),
            (HIDDEN, HIDDEN),
            (HIDDEN, HIDDEN),
            (HIDDEN, HIDDEN),
            (HIDDEN, action_size)]
    params = []
    for i, (fan_in, fan_out) in enumerate(dims):
        kw, kb = jax.random.split(jax.random.fold_in(key, i))
        bound = 1.0 / (fan_in ** 0.5)  # PyTorch nn.Linear default init range
        w = jax.random.uniform(kw, (fan_in, fan_out), jnp.float32, -bound, bound)
        b = jax.random.uniform(kb, (1, fan_out), jnp.float32, -bound, bound)
        params.append((w, b))
    return params


def reference_forward_bf16(x, params):
    """Reference matching the kernel's bf16-operand / f32-accumulate / bf16-output numerics."""
    h = x.astype(jnp.float32)
    for i, (w, b) in enumerate(params):
        h = jnp.dot(h.astype(jnp.bfloat16), w.astype(jnp.bfloat16),
                    preferred_element_type=jnp.float32) + b.astype(jnp.float32)
        if i < len(params) - 1:
            h = jnp.maximum(h, 0.0)
    return h.astype(jnp.bfloat16).astype(jnp.float32)


def reference_forward_f32(x, params):
    h = x
    for i, (w, b) in enumerate(params):
        h = h @ w + b
        if i < len(params) - 1:
            h = jnp.maximum(h, 0.0)
    return h


if __name__ == "__main__":
    state_size = 16
    action_size = 4

    key = jax.random.PRNGKey(0)
    kx, kp, kx2 = jax.random.split(key, 3)
    params = init_params(kp, state_size, action_size)

    # Small case (batch=2) — exercises the minimum-tile / padding path.
    batch = 2
    x = jax.random.normal(kx, (batch, state_size), jnp.float32)
    out = jax.block_until_ready(dqn_forward(x, params))

    ref_bf16 = reference_forward_bf16(x, params)
    ref_f32 = reference_forward_f32(x, params)

    assert out.shape == (batch, action_size), out.shape
    assert jnp.allclose(out, ref_bf16, atol=1e-2, rtol=1e-2), "mismatch vs bf16 reference"
    assert jnp.allclose(out, ref_f32, atol=5e-2, rtol=5e-2), "mismatch vs f32 reference"

    # Larger, non-multiple-of-8 batch — exercises the multi-step grid and low-waste padding.
    batch2 = 37
    x2 = jax.random.normal(kx2, (batch2, state_size), jnp.float32)
    out2 = jax.block_until_ready(dqn_forward(x2, params))
    ref2 = reference_forward_bf16(x2, params)
    assert out2.shape == (batch2, action_size), out2.shape
    assert jnp.allclose(out2, ref2, atol=1e-2, rtol=1e-2), "mismatch vs bf16 reference (batch=37)"

    print("KERNEL_OK")
</pallas_src>

<mosaic_0001>
module attributes {stable_mosaic.version = 11 : i64} {
  func.func @_dqn_mlp_kernel(%arg0: i32, %arg1: memref<8x16xbf16, #tpu.memory_space<vmem>>, %arg2: memref<16x256xbf16, #tpu.memory_space<vmem>>, %arg3: memref<1x256xf32, #tpu.memory_space<vmem>>, %arg4: memref<256x256xbf16, #tpu.memory_space<vmem>>, %arg5: memref<1x256xf32, #tpu.memory_space<vmem>>, %arg6: memref<256x256xbf16, #tpu.memory_space<vmem>>, %arg7: memref<1x256xf32, #tpu.memory_space<vmem>>, %arg8: memref<256x256xbf16, #tpu.memory_space<vmem>>, %arg9: memref<1x256xf32, #tpu.memory_space<vmem>>, %arg10: memref<256x128xbf16, #tpu.memory_space<vmem>>, %arg11: memref<1x128xf32, #tpu.memory_space<vmem>>, %arg12: memref<8x128xbf16, #tpu.memory_space<vmem>>) attributes {dimension_semantics = [#tpu.dimension_semantics<parallel>], iteration_bounds = array<i64: 2>, scalar_prefetch = 0 : i64, scratch_operands = 0 : i64, tpu.core_type = #tpu.core_type<tc>, window_params = [{transform_indices = @transform_0, window_bounds = array<i64: 8, 16>}, {pipeline_mode = #tpu.pipeline_mode<synchronous>, transform_indices = @transform_1, window_bounds = array<i64: 16, 256>}, {pipeline_mode = #tpu.pipeline_mode<synchronous>, transform_indices = @transform_2, window_bounds = array<i64: 1, 256>}, {pipeline_mode = #tpu.pipeline_mode<synchronous>, transform_indices = @transform_3, window_bounds = array<i64: 256, 256>}, {pipeline_mode = #tpu.pipeline_mode<synchronous>, transform_indices = @transform_4, window_bounds = array<i64: 1, 256>}, {pipeline_mode = #tpu.pipeline_mode<synchronous>, transform_indices = @transform_5, window_bounds = array<i64: 256, 256>}, {pipeline_mode = #tpu.pipeline_mode<synchronous>, transform_indices = @transform_6, window_bounds = array<i64: 1, 256>}, {pipeline_mode = #tpu.pipeline_mode<synchronous>, transform_indices = @transform_7, window_bounds = array<i64: 256, 256>}, {pipeline_mode = #tpu.pipeline_mode<synchronous>, transform_indices = @transform_8, window_bounds = array<i64: 1, 256>}, {pipeline_mode = #tpu.pipeline_mode<synchronous>, transform_indices = @transform_9, window_bounds = array<i64: 256, 128>}, {pipeline_mode = #tpu.pipeline_mode<synchronous>, transform_indices = @transform_10, window_bounds = array<i64: 1, 128>}, {transform_indices = @transform_11, window_bounds = array<i64: 8, 128>}]} {
    %c0 = arith.constant 0 : index
    %c0_0 = arith.constant 0 : index
    %0 = vector.load %arg1[%c0, %c0_0] : memref<8x16xbf16, #tpu.memory_space<vmem>>, vector<8x16xbf16>
    %c0_1 = arith.constant 0 : index
    %c0_2 = arith.constant 0 : index
    %1 = vector.load %arg2[%c0_1, %c0_2] : memref<16x256xbf16, #tpu.memory_space<vmem>>, vector<16x256xbf16>
    %cst = arith.constant dense<0.000000e+00> : vector<8x256xf32>
    %2 = tpu.matmul %0, %1, %cst {dimension_numbers = #tpu.dot_dimension_numbers<[1], [0], [0], [1], [0, 0, 1, 1], [], []>} : vector<8x16xbf16>, vector<16x256xbf16>, vector<8x256xf32> -> vector<8x256xf32>
    %c0_3 = arith.constant 0 : index
    %c0_4 = arith.constant 0 : index
    %3 = vector.load %arg3[%c0_3, %c0_4] : memref<1x256xf32, #tpu.memory_space<vmem>>, vector<1x256xf32>
    %4 = vector.broadcast %3 : vector<1x256xf32> to vector<8x256xf32>
    %5 = arith.addf %2, %4 : vector<8x256xf32>
    %cst_5 = arith.constant 0.000000e+00 : f32
    %6 = vector.broadcast %cst_5 : f32 to vector<8x256xf32>
    %7 = arith.maximumf %5, %6 : vector<8x256xf32>
    %8 = arith.truncf %7 : vector<8x256xf32> to vector<8x256xbf16>
    %c0_6 = arith.constant 0 : index
    %c0_7 = arith.constant 0 : index
    %9 = vector.load %arg4[%c0_6, %c0_7] : memref<256x256xbf16, #tpu.memory_space<vmem>>, vector<256x256xbf16>
    %cst_8 = arith.constant dense<0.000000e+00> : vector<8x256xf32>
    %10 = tpu.matmul %8, %9, %cst_8 {dimension_numbers = #tpu.dot_dimension_numbers<[1], [0], [0], [1], [0, 0, 1, 1], [], []>} : vector<8x256xbf16>, vector<256x256xbf16>, vector<8x256xf32> -> vector<8x256xf32>
    %c0_9 = arith.constant 0 : index
    %c0_10 = arith.constant 0 : index
    %11 = vector.load %arg5[%c0_9, %c0_10] : memref<1x256xf32, #tpu.memory_space<vmem>>, vector<1x256xf32>
    %12 = vector.broadcast %11 : vector<1x256xf32> to vector<8x256xf32>
    %13 = arith.addf %10, %12 : vector<8x256xf32>
    %cst_11 = arith.constant 0.000000e+00 : f32
    %14 = vector.broadcast %cst_11 : f32 to vector<8x256xf32>
    %15 = arith.maximumf %13, %14 : vector<8x256xf32>
    %16 = arith.truncf %15 : vector<8x256xf32> to vector<8x256xbf16>
    %c0_12 = arith.constant 0 : index
    %c0_13 = arith.constant 0 : index
    %17 = vector.load %arg6[%c0_12, %c0_13] : memref<256x256xbf16, #tpu.memory_space<vmem>>, vector<256x256xbf16>
    %cst_14 = arith.constant dense<0.000000e+00> : vector<8x256xf32>
    %18 = tpu.matmul %16, %17, %cst_14 {dimension_numbers = #tpu.dot_dimension_numbers<[1], [0], [0], [1], [0, 0, 1, 1], [], []>} : vector<8x256xbf16>, vector<256x256xbf16>, vector<8x256xf32> -> vector<8x256xf32>
    %c0_15 = arith.constant 0 : index
    %c0_16 = arith.constant 0 : index
    %19 = vector.load %arg7[%c0_15, %c0_16] : memref<1x256xf32, #tpu.memory_space<vmem>>, vector<1x256xf32>
    %20 = vector.broadcast %19 : vector<1x256xf32> to vector<8x256xf32>
    %21 = arith.addf %18, %20 : vector<8x256xf32>
    %cst_17 = arith.constant 0.000000e+00 : f32
    %22 = vector.broadcast %cst_17 : f32 to vector<8x256xf32>
    %23 = arith.maximumf %21, %22 : vector<8x256xf32>
    %24 = arith.truncf %23 : vector<8x256xf32> to vector<8x256xbf16>
    %c0_18 = arith.constant 0 : index
    %c0_19 = arith.constant 0 : index
    %25 = vector.load %arg8[%c0_18, %c0_19] : memref<256x256xbf16, #tpu.memory_space<vmem>>, vector<256x256xbf16>
    %cst_20 = arith.constant dense<0.000000e+00> : vector<8x256xf32>
    %26 = tpu.matmul %24, %25, %cst_20 {dimension_numbers = #tpu.dot_dimension_numbers<[1], [0], [0], [1], [0, 0, 1, 1], [], []>} : vector<8x256xbf16>, vector<256x256xbf16>, vector<8x256xf32> -> vector<8x256xf32>
    %c0_21 = arith.constant 0 : index
    %c0_22 = arith.constant 0 : index
    %27 = vector.load %arg9[%c0_21, %c0_22] : memref<1x256xf32, #tpu.memory_space<vmem>>, vector<1x256xf32>
    %28 = vector.broadcast %27 : vector<1x256xf32> to vector<8x256xf32>
    %29 = arith.addf %26, %28 : vector<8x256xf32>
    %cst_23 = arith.constant 0.000000e+00 : f32
    %30 = vector.broadcast %cst_23 : f32 to vector<8x256xf32>
    %31 = arith.maximumf %29, %30 : vector<8x256xf32>
    %32 = arith.truncf %31 : vector<8x256xf32> to vector<8x256xbf16>
    %c0_24 = arith.constant 0 : index
    %c0_25 = arith.constant 0 : index
    %33 = vector.load %arg10[%c0_24, %c0_25] : memref<256x128xbf16, #tpu.memory_space<vmem>>, vector<256x128xbf16>
    %cst_26 = arith.constant dense<0.000000e+00> : vector<8x128xf32>
    %34 = tpu.matmul %32, %33, %cst_26 {dimension_numbers = #tpu.dot_dimension_numbers<[1], [0], [0], [1], [0, 0, 1, 1], [], []>} : vector<8x256xbf16>, vector<256x128xbf16>, vector<8x128xf32> -> vector<8x128xf32>
    %c0_27 = arith.constant 0 : index
    %c0_28 = arith.constant 0 : index
    %35 = vector.load %arg11[%c0_27, %c0_28] : memref<1x128xf32, #tpu.memory_space<vmem>>, vector<1x128xf32>
    %36 = vector.broadcast %35 : vector<1x128xf32> to vector<8x128xf32>
    %37 = arith.addf %34, %36 : vector<8x128xf32>
    %38 = arith.truncf %37 : vector<8x128xf32> to vector<8x128xbf16>
    %c0_29 = arith.constant 0 : index
    %c0_30 = arith.constant 0 : index
    %39 = vector.load %arg12[%c0_29, %c0_30] : memref<8x128xbf16, #tpu.memory_space<vmem>>, vector<8x128xbf16>
    tpu.vector_store %arg12[%c0_29, %c0_30], %38 {strides = array<i32>} : memref<8x128xbf16, #tpu.memory_space<vmem>>, vector<8x128xbf16>,
    return
  }
  func.func @transform_0(%arg0: i32) -> (i32, i32) {
    %c0_i32 = arith.constant 0 : i32
    %c0_i32_0 = arith.constant 0 : i32
    return %arg0, %c0_i32 : i32, i32
  }
  func.func @transform_1(%arg0: i32) -> (i32, i32) {
    %c0_i32 = arith.constant 0 : i32
    %c0_i32_0 = arith.constant 0 : i32
    %c0_i32_1 = arith.constant 0 : i32
    return %c0_i32, %c0_i32_0 : i32, i32
  }
  func.func @transform_2(%arg0: i32) -> (i32, i32) {
    %c0_i32 = arith.constant 0 : i32
    %c0_i32_0 = arith.constant 0 : i32
    %c0_i32_1 = arith.constant 0 : i32
    return %c0_i32, %c0_i32_0 : i32, i32
  }
  func.func @transform_3(%arg0: i32) -> (i32, i32) {
    %c0_i32 = arith.constant 0 : i32
    %c0_i32_0 = arith.constant 0 : i32
    %c0_i32_1 = arith.constant 0 : i32
    return %c0_i32, %c0_i32_0 : i32, i32
  }
  func.func @transform_4(%arg0: i32) -> (i32, i32) {
    %c0_i32 = arith.constant 0 : i32
    %c0_i32_0 = arith.constant 0 : i32
    %c0_i32_1 = arith.constant 0 : i32
    return %c0_i32, %c0_i32_0 : i32, i32
  }
  func.func @transform_5(%arg0: i32) -> (i32, i32) {
    %c0_i32 = arith.constant 0 : i32
    %c0_i32_0 = arith.constant 0 : i32
    %c0_i32_1 = arith.constant 0 : i32
    return %c0_i32, %c0_i32_0 : i32, i32
  }
  func.func @transform_6(%arg0: i32) -> (i32, i32) {
    %c0_i32 = arith.constant 0 : i32
    %c0_i32_0 = arith.constant 0 : i32
    %c0_i32_1 = arith.constant 0 : i32
    return %c0_i32, %c0_i32_0 : i32, i32
  }
  func.func @transform_7(%arg0: i32) -> (i32, i32) {
    %c0_i32 = arith.constant 0 : i32
    %c0_i32_0 = arith.constant 0 : i32
    %c0_i32_1 = arith.constant 0 : i32
    return %c0_i32, %c0_i32_0 : i32, i32
  }
  func.func @transform_8(%arg0: i32) -> (i32, i32) {
    %c0_i32 = arith.constant 0 : i32
    %c0_i32_0 = arith.constant 0 : i32
    %c0_i32_1 = arith.constant 0 : i32
    return %c0_i32, %c0_i32_0 : i32, i32
  }
  func.func @transform_9(%arg0: i32) -> (i32, i32) {
    %c0_i32 = arith.constant 0 : i32
    %c0_i32_0 = arith.constant 0 : i32
    %c0_i32_1 = arith.constant 0 : i32
    return %c0_i32, %c0_i32_0 : i32, i32
  }
  func.func @transform_10(%arg0: i32) -> (i32, i32) {
    %c0_i32 = arith.constant 0 : i32
    %c0_i32_0 = arith.constant 0 : i32
    %c0_i32_1 = arith.constant 0 : i32
    return %c0_i32, %c0_i32_0 : i32, i32
  }
  func.func @transform_11(%arg0: i32) -> (i32, i32) {
    %c0_i32 = arith.constant 0 : i32
    %c0_i32_0 = arith.constant 0 : i32
    return %arg0, %c0_i32 : i32, i32
  }
}

</mosaic_0001>

<llo_original>
// kernel: tpu_custom_call.1
$region0: #{tpu_custom_call.1}
  #allocation0 [shape = 'u32[]', space=smem, size = 0x4, offset = 0x4, fixed_abs, tag = 'smem constant byte address 0x4 - core index']
  #allocation1 [shape = 'u32[72,128]{1,0:T(1,128)}', space=vmem, size = 0x9000, scoped, tag = 'internal scratch']
  %s0 = inlined_call_operand.hbm [shape: bf16[16,16], index: 0, kind: input, shape index: {}]
  %s1 = inlined_call_operand.hbm [shape: bf16[16,256], index: 1, kind: input, shape index: {}]
  %s2 = inlined_call_operand.hbm [shape: f32[1,256], index: 2, kind: input, shape index: {}]
  %s3 = inlined_call_operand.hbm [shape: bf16[256,256], index: 3, kind: input, shape index: {}]
  %s4 = inlined_call_operand.vmem [shape: f32[1,256], index: 4, kind: input, shape index: {}]
  %s5 = inlined_call_operand.hbm [shape: bf16[256,256], index: 5, kind: input, shape index: {}]
  %s6 = inlined_call_operand.vmem [shape: f32[1,256], index: 6, kind: input, shape index: {}]
  %s7 = inlined_call_operand.hbm [shape: bf16[256,256], index: 7, kind: input, shape index: {}]
  %s8 = inlined_call_operand.vmem [shape: f32[1,256], index: 8, kind: input, shape index: {}]
  %s9 = inlined_call_operand.hbm [shape: bf16[256,128], index: 9, kind: input, shape index: {}]
  %s10 = inlined_call_operand.vmem [shape: f32[1,128], index: 10, kind: input, shape index: {}]
  %s11 = inlined_call_operand.hbm [shape: bf16[16,128], index: 11, kind: output, shape index: {}]
  %s12 = sld [smem:[#allocation0]]
  $region105: #{tpu_custom_call.1} parent=0
    _
  %s14 = ssub.s32 1, %s12
  %s15 = scalar_select 0, %s14, %s12
  $region1: #{tpu_custom_call.1} parent=0
    #allocation2 [shape = 'u8[4096]{0}', space=vmem, size = 0x1000, scoped, tag = 'input window, operand 0']
    #allocation3 [shape = 's32[2]{0}', space=sflag, size = 0x8, scoped, tag = 'scoped memory for tpu_custom_call.1']
    #allocation4 [shape = 's32[2]{0}', space=sflag, size = 0x8, scoped, tag = 'scoped memory for tpu_custom_call.1']
    #allocation5 [shape = 'u8[8192]{0}', space=vmem, size = 0x2000, scoped, tag = 'input window, operand 1, single buffered']
    #allocation6 [shape = 's32[1]{0}', space=sflag, size = 0x4, scoped, tag = 'scoped memory for tpu_custom_call.1']
    #allocation7 [shape = 'u8[1024]{0}', space=vmem, size = 0x400, scoped, tag = 'input window, operand 2, single buffered']
    #allocation8 [shape = 'u8[131072]{0}', space=vmem, size = 0x20000, scoped, tag = 'input window, operand 3, single buffered']
    #allocation9 [shape = 's32[1]{0}', space=sflag, size = 0x4, scoped, tag = 'scoped memory for tpu_custom_call.1']
    #allocation10 [shape = 'u8[131072]{0}', space=vmem, size = 0x20000, scoped, tag = 'input window, operand 5, single buffered']
    #allocation11 [shape = 'u8[131072]{0}', space=vmem, size = 0x20000, scoped, tag = 'input window, operand 7, single buffered']
    #allocation12 [shape = 's32[1]{0}', space=sflag, size = 0x4, scoped, tag = 'scoped memory for tpu_custom_call.1']
    #allocation13 [shape = 'u8[65536]{0}', space=vmem, size = 0x10000, scoped, tag = 'input window, operand 9, single buffered']
    #allocation14 [shape = 'u8[4096]{0}', space=vmem, size = 0x1000, scoped, tag = 'output window, operand 0']
    %16 = vsyncpa [#allocation3], 0
    %s17 = scalar_lea.sflag [#allocation3], 1
    %18 = vsyncpa %s17, 0
    %19 = vsyncpa [#allocation6], 0
    %20 = vsyncpa [#allocation9], 0
    %21 = vsyncpa [#allocation12], 0
    %22 = vsyncpa [#allocation4], 0
    %s23 = scalar_lea.sflag [#allocation4], 1
    %24 = vsyncpa %s23, 0
    loop: start=0, step=1, limit=4
    $region2: #{tpu_custom_call.1} parent=1 // loop_pre_header
      _
    $region3: #{tpu_custom_call.1} parent=1 // loop_header
      %s26 = sphi 0, %s30
      %p27 = scmp.ge.s32.totalorder %s26, 4
      %s36 = sphi 0, %s38
      %s39 = sphi 0, %s36
      %s40 = sphi 0, %s39
      %s56 = sphi 0, %s40
      %s60 = sphi 0, %s60
      %s62 = sphi 0, %s60
      %s63 = sphi 0, %s62
      %s77 = sphi 0, %s63
      %s81 = sphi 0, %s81
      %s83 = sphi 0, %s81
      %s84 = sphi 0, %s83
      %s98 = sphi 0, %s84
      %s102 = sphi 0, %s102
      %s104 = sphi 0, %s102
      %s105 = sphi 0, %s104
      %s119 = sphi 0, %s105
      %s123 = sphi 0, %s123
      %s125 = sphi 0, %s123
      %s126 = sphi 0, %s125
      %s140 = sphi 0, %s126
      %s144 = sphi 0, %s144
      %s146 = sphi 0, %s144
      %s147 = sphi 0, %s146
      %s161 = sphi 0, %s147
      %s165 = sphi 0, %s165
      %s167 = sphi 0, %s165
      %s168 = sphi 0, %s167
      %s182 = sphi 0, %s168
      %s186 = sphi 0, %s186
      %s188 = sphi 0, %s186
      %s189 = sphi 0, %s188
      %s203 = sphi 0, %s189
      %s207 = sphi 0, %s207
      %s209 = sphi 0, %s207
      %s210 = sphi 0, %s209
      %s224 = sphi 0, %s210
      %s228 = sphi 0, %s228
      %s230 = sphi 0, %s228
      %s231 = sphi 0, %s230
      %s245 = sphi 0, %s231
      %s249 = sphi 0, %s249
      %s251 = sphi 0, %s249
      %s252 = sphi 0, %s251
      %s266 = sphi 0, %s252
      %s272 = sphi 0, %s274
      %s275 = sphi 0, %s272
      %s276 = sphi 0, %s275
      %s292 = sphi 0, %s276
    $region4: #{tpu_custom_call.1} parent=1 // loop_header_branch
      %29 = sbr.rel (%p27) target = $region8
    $region5: #{tpu_custom_call.1} parent=1 // loop_body
      %s31 = ssub.s32 %s26, 1
      %s32 = ssub.s32 %s26, 2
      %s33 = sadd.s32 %s26, 1
      %s34 = ssub.s32 %s26, %s33
      %p35 = scmp.eq.s32.totalorder %s34, 0
      %s37 = sadd.s32 %s36, 1
      %s38 = scalar_select %p35, %s36, %s37
      %p41 = pneg %p35
      %p42 = scmp.eq.s32.totalorder %s26, 1
      %p43 = por %p41, %p42
      %p44 = scmp.ne.s32.totalorder %s36, %s39
      %p45 = scmp.eq.s32.totalorder %s26, 0
      %p46 = por %p44, %p45
      %p47 = scmp.ne.s32.totalorder %s36, %s39
      %p48 = scmp.eq.s32.totalorder %s31, 1
      %p49 = por %p47, %p48
      %p50 = scmp.ne.s32.totalorder %s39, %s40
      %p51 = scmp.eq.s32.totalorder %s31, 0
      %p52 = por %p50, %p51
      %p53 = scmp.ne.s32.totalorder %s39, %s40
      %p54 = scmp.eq.s32.totalorder %s32, 1
      %p55 = por %p53, %p54
      %p57 = scmp.ne.s32.totalorder %s40, %s56
      %p58 = scmp.eq.s32.totalorder %s32, 0
      %p59 = por %p57, %p58
      %s61 = sadd.s32 %s60, 1
      %p64 = scmp.eq.s32.totalorder %s26, 1
      %p65 = scmp.ne.s32.totalorder %s60, %s62
      %p66 = scmp.eq.s32.totalorder %s26, 0
      %p67 = por %p65, %p66
      %p68 = scmp.ne.s32.totalorder %s60, %s62
      %p69 = scmp.eq.s32.totalorder %s31, 1
      %p70 = por %p68, %p69
      %p71 = scmp.ne.s32.totalorder %s62, %s63
      %p72 = scmp.eq.s32.totalorder %s31, 0
      %p73 = por %p71, %p72
      %p74 = scmp.ne.s32.totalorder %s62, %s63
      %p75 = scmp.eq.s32.totalorder %s32, 1
      %p76 = por %p74, %p75
      %p78 = scmp.ne.s32.totalorder %s63, %s77
      %p79 = scmp.eq.s32.totalorder %s32, 0
      %p80 = por %p78, %p79
      %s82 = sadd.s32 %s81, 1
      %p85 = scmp.eq.s32.totalorder %s26, 1
      %p86 = scmp.ne.s32.totalorder %s81, %s83
      %p87 = scmp.eq.s32.totalorder %s26, 0
      %p88 = por %p86, %p87
      %p89 = scmp.ne.s32.totalorder %s81, %s83
      %p90 = scmp.eq.s32.totalorder %s31, 1
      %p91 = por %p89, %p90
      %p92 = scmp.ne.s32.totalorder %s83, %s84
      %p93 = scmp.eq.s32.totalorder %s31, 0
      %p94 = por %p92, %p93
      %p95 = scmp.ne.s32.totalorder %s83, %s84
      %p96 = scmp.eq.s32.totalorder %s32, 1
      %p97 = por %p95, %p96
      %p99 = scmp.ne.s32.totalorder %s84, %s98
      %p100 = scmp.eq.s32.totalorder %s32, 0
      %p101 = por %p99, %p100
      %s103 = sadd.s32 %s102, 1
      %p106 = scmp.eq.s32.totalorder %s26, 1
      %p107 = scmp.ne.s32.totalorder %s102, %s104
      %p108 = scmp.eq.s32.totalorder %s26, 0
      %p109 = por %p107, %p108
      %p110 = scmp.ne.s32.totalorder %s102, %s104
      %p111 = scmp.eq.s32.totalorder %s31, 1
      %p112 = por %p110, %p111
      %p113 = scmp.ne.s32.totalorder %s104, %s105
      %p114 = scmp.eq.s32.totalorder %s31, 0
      %p115 = por %p113, %p114
      %p116 = scmp.ne.s32.totalorder %s104, %s105
      %p117 = scmp.eq.s32.totalorder %s32, 1
      %p118 = por %p116, %p117
      %p120 = scmp.ne.s32.totalorder %s105, %s119
      %p121 = scmp.eq.s32.totalorder %s32, 0
      %p122 = por %p120, %p121
      %s124 = sadd.s32 %s123, 1
      %p127 = scmp.eq.s32.totalorder %s26, 1
      %p128 = scmp.ne.s32.totalorder %s123, %s125
      %p129 = scmp.eq.s32.totalorder %s26, 0
      %p130 = por %p128, %p129
      %p131 = scmp.ne.s32.totalorder %s123, %s125
      %p132 = scmp.eq.s32.totalorder %s31, 1
      %p133 = por %p131, %p132
      %p134 = scmp.ne.s32.totalorder %s125, %s126
      %p135 = scmp.eq.s32.totalorder %s31, 0
      %p136 = por %p134, %p135
      %p137 = scmp.ne.s32.totalorder %s125, %s126
      %p138 = scmp.eq.s32.totalorder %s32, 1
      %p139 = por %p137, %p138
      %p141 = scmp.ne.s32.totalorder %s126, %s140
      %p142 = scmp.eq.s32.totalorder %s32, 0
      %p143 = por %p141, %p142
      %s145 = sadd.s32 %s144, 1
      %p148 = scmp.eq.s32.totalorder %s26, 1
      %p149 = scmp.ne.s32.totalorder %s144, %s146
      %p150 = scmp.eq.s32.totalorder %s26, 0
      %p151 = por %p149, %p150
      %p152 = scmp.ne.s32.totalorder %s144, %s146
      %p153 = scmp.eq.s32.totalorder %s31, 1
      %p154 = por %p152, %p153
      %p155 = scmp.ne.s32.totalorder %s146, %s147
      %p156 = scmp.eq.s32.totalorder %s31, 0
      %p157 = por %p155, %p156
      %p158 = scmp.ne.s32.totalorder %s146, %s147
      %p159 = scmp.eq.s32.totalorder %s32, 1
      %p160 = por %p158, %p159
      %p162 = scmp.ne.s32.totalorder %s147, %s161
      %p163 = scmp.eq.s32.totalorder %s32, 0
      %p164 = por %p162, %p163
      %s166 = sadd.s32 %s165, 1
      %p169 = scmp.eq.s32.totalorder %s26, 1
      %p170 = scmp.ne.s32.totalorder %s165, %s167
      %p171 = scmp.eq.s32.totalorder %s26, 0
      %p172 = por %p170, %p171
      %p173 = scmp.ne.s32.totalorder %s165, %s167
      %p174 = scmp.eq.s32.totalorder %s31, 1
      %p175 = por %p173, %p174
      %p176 = scmp.ne.s32.totalorder %s167, %s168
      %p177 = scmp.eq.s32.totalorder %s31, 0
      %p178 = por %p176, %p177
      %p179 = scmp.ne.s32.totalorder %s167, %s168
      %p180 = scmp.eq.s32.totalorder %s32, 1
      %p181 = por %p179, %p180
      %p183 = scmp.ne.s32.totalorder %s168, %s182
      %p184 = scmp.eq.s32.totalorder %s32, 0
      %p185 = por %p183, %p184
      %s187 = sadd.s32 %s186, 1
      %p190 = scmp.eq.s32.totalorder %s26, 1
      %p191 = scmp.ne.s32.totalorder %s186, %s188
      %p192 = scmp.eq.s32.totalorder %s26, 0
      %p193 = por %p191, %p192
      %p194 = scmp.ne.s32.totalorder %s186, %s188
      %p195 = scmp.eq.s32.totalorder %s31, 1
      %p196 = por %p194, %p195
      %p197 = scmp.ne.s32.totalorder %s188, %s189
      %p198 = scmp.eq.s32.totalorder %s31, 0
      %p199 = por %p197, %p198
      %p200 = scmp.ne.s32.totalorder %s188, %s189
      %p201 = scmp.eq.s32.totalorder %s32, 1
      %p202 = por %p200, %p201
      %p204 = scmp.ne.s32.totalorder %s189, %s203
      %p205 = scmp.eq.s32.totalorder %s32, 0
      %p206 = por %p204, %p205
      %s208 = sadd.s32 %s207, 1
      %p211 = scmp.eq.s32.totalorder %s26, 1
      %p212 = scmp.ne.s32.totalorder %s207, %s209
      %p213 = scmp.eq.s32.totalorder %s26, 0
      %p214 = por %p212, %p213
      %p215 = scmp.ne.s32.totalorder %s207, %s209
      %p216 = scmp.eq.s32.totalorder %s31, 1
      %p217 = por %p215, %p216
      %p218 = scmp.ne.s32.totalorder %s209, %s210
      %p219 = scmp.eq.s32.totalorder %s31, 0
      %p220 = por %p218, %p219
      %p221 = scmp.ne.s32.totalorder %s209, %s210
      %p222 = scmp.eq.s32.totalorder %s32, 1
      %p223 = por %p221, %p222
      %p225 = scmp.ne.s32.totalorder %s210, %s224
      %p226 = scmp.eq.s32.totalorder %s32, 0
      %p227 = por %p225, %p226
      %s229 = sadd.s32 %s228, 1
      %p232 = scmp.eq.s32.totalorder %s26, 1
      %p233 = scmp.ne.s32.totalorder %s228, %s230
      %p234 = scmp.eq.s32.totalorder %s26, 0
      %p235 = por %p233, %p234
      %p236 = scmp.ne.s32.totalorder %s228, %s230
      %p237 = scmp.eq.s32.totalorder %s31, 1
      %p238 = por %p236, %p237
      %p239 = scmp.ne.s32.totalorder %s230, %s231
      %p240 = scmp.eq.s32.totalorder %s31, 0
      %p241 = por %p239, %p240
      %p242 = scmp.ne.s32.totalorder %s230, %s231
      %p243 = scmp.eq.s32.totalorder %s32, 1
      %p244 = por %p242, %p243
      %p246 = scmp.ne.s32.totalorder %s231, %s245
      %p247 = scmp.eq.s32.totalorder %s32, 0
      %p248 = por %p246, %p247
      %s250 = sadd.s32 %s249, 1
      %p253 = scmp.eq.s32.totalorder %s26, 1
      %p254 = scmp.ne.s32.totalorder %s249, %s251
      %p255 = scmp.eq.s32.totalorder %s26, 0
      %p256 = por %p254, %p255
      %p257 = scmp.ne.s32.totalorder %s249, %s251
      %p258 = scmp.eq.s32.totalorder %s31, 1
      %p259 = por %p257, %p258
      %p260 = scmp.ne.s32.totalorder %s251, %s252
      %p261 = scmp.eq.s32.totalorder %s31, 0
      %p262 = por %p260, %p261
      %p263 = scmp.ne.s32.totalorder %s251, %s252
      %p264 = scmp.eq.s32.totalorder %s32, 1
      %p265 = por %p263, %p264
      %p267 = scmp.ne.s32.totalorder %s252, %s266
      %p268 = scmp.eq.s32.totalorder %s32, 0
      %p269 = por %p267, %p268
      %s270 = ssub.s32 %s26, %s33
      %p271 = scmp.eq.s32.totalorder %s270, 0
      %s273 = sadd.s32 %s272, 1
      %s274 = scalar_select %p271, %s272, %s273
      %p277 = pneg %p271
      %p278 = scmp.eq.s32.totalorder %s26, 1
      %p279 = por %p277, %p278
      %p280 = scmp.ne.s32.totalorder %s272, %s275
      %p281 = scmp.eq.s32.totalorder %s26, 0
      %p282 = por %p280, %p281
      %p283 = scmp.ne.s32.totalorder %s272, %s275
      %p284 = scmp.eq.s32.totalorder %s31, 1
      %p285 = por %p283, %p284
      %p286 = scmp.ne.s32.totalorder %s275, %s276
      %p287 = scmp.eq.s32.totalorder %s31, 0
      %p288 = por %p286, %p287
      %p289 = scmp.ne.s32.totalorder %s275, %s276
      %p290 = scmp.eq.s32.totalorder %s32, 1
      %p291 = por %p289, %p290
      %p293 = scmp.ne.s32.totalorder %s276, %s292
      %p294 = scmp.eq.s32.totalorder %s32, 0
      %p295 = por %p293, %p294
      %p296 = scmp.le.s32.totalorder 1, %s26
      %p297 = scmp.lt.s32.totalorder %s26, 3
      %p298 = pnand %p296, %p297
      %p299 = pneg %p298
      // Predicated region
      $region9: #{tpu_custom_call.1} parent=5 // pred_check
        _
      $region10: #{tpu_custom_call.1} parent=5 // pred_check_branch
        %301 = sbr.rel (%p298) target = $region12
      $region11: #{tpu_custom_call.1} parent=5 // pred_region
        %s302 = ssub.s32 %s26, 1
        // Predicated region
        $region13: #{tpu_custom_call.1} parent=11 // pred_check
          %p303 = pneg %p73
        $region14: #{tpu_custom_call.1} parent=11 // pred_check_branch
          %305 = sbr.rel (%p303) target = $region16
        $region15: #{tpu_custom_call.1} parent=11 // pred_region
          %307 = vsyncadd [#allocation6], 0
          %s308 = sshll.u32 %s1, 4
          %s309 = int_to_ptr.hbm [resolvable:$true] %s308
          %s310 = sshll.u32 [#allocation5], 4
          %s311 = int_to_ptr.vmem [resolvable:$true] %s310
          %316 = dma.hbm_to_vmem [thread:$0]  %s309, 256, %s311, [#allocation6], 128, 128, 8
        $region16: #{tpu_custom_call.1} parent=11 // pred_fallthru
          _
        // Predicated region
        $region17: #{tpu_custom_call.1} parent=11 // pred_check
          %p317 = pneg %p94
        $region18: #{tpu_custom_call.1} parent=11 // pred_check_branch
          %319 = sbr.rel (%p317) target = $region20
        $region19: #{tpu_custom_call.1} parent=11 // pred_region
          %321 = vsyncadd [#allocation6], 0
          %s323 = sshll.u32 %s2, 4
          %s324 = int_to_ptr.hbm [resolvable:$true] %s323
          %s325 = sshll.u32 [#allocation7], 4
          %s326 = int_to_ptr.vmem [resolvable:$true] %s325
          %328 = dma.hbm_to_vmem [thread:$0]  %s324, 32, %s326, [#allocation6]
        $region20: #{tpu_custom_call.1} parent=11 // pred_fallthru
          _
        // Predicated region
        $region21: #{tpu_custom_call.1} parent=11 // pred_check
          %p329 = pneg %p115
        $region22: #{tpu_custom_call.1} parent=11 // pred_check_branch
          %331 = sbr.rel (%p329) target = $region24
        $region23: #{tpu_custom_call.1} parent=11 // pred_region
          %333 = vsyncadd [#allocation9], 0
          %s334 = sshll.u32 %s3, 4
          %s335 = int_to_ptr.hbm [resolvable:$true] %s334
          %s336 = sshll.u32 [#allocation8], 4
          %s337 = int_to_ptr.vmem [resolvable:$true] %s336
          %342 = dma.hbm_to_vmem [thread:$0]  %s335, 4096, %s337, [#allocation9], 128, 128, 8
        $region24: #{tpu_custom_call.1} parent=11 // pred_fallthru
          _
        // Predicated region
        $region25: #{tpu_custom_call.1} parent=11 // pred_check
          %p343 = pneg %p136
        $region26: #{tpu_custom_call.1} parent=11 // pred_check_branch
          %345 = sbr.rel (%p343) target = $region28
        $region27: #{tpu_custom_call.1} parent=11 // pred_region
          _
        $region28: #{tpu_custom_call.1} parent=11 // pred_fallthru
          _
        // Predicated region
        $region29: #{tpu_custom_call.1} parent=11 // pred_check
          %p346 = pneg %p157
        $region30: #{tpu_custom_call.1} parent=11 // pred_check_branch
          %348 = sbr.rel (%p346) target = $region32
        $region31: #{tpu_custom_call.1} parent=11 // pred_region
          %350 = vsyncadd [#allocation9], 0
          %s351 = sshll.u32 %s5, 4
          %s352 = int_to_ptr.hbm [resolvable:$true] %s351
          %s353 = sshll.u32 [#allocation10], 4
          %s354 = int_to_ptr.vmem [resolvable:$true] %s353
          %359 = dma.hbm_to_vmem [thread:$0]  %s352, 4096, %s354, [#allocation9], 128, 128, 8
        $region32: #{tpu_custom_call.1} parent=11 // pred_fallthru
          _
        // Predicated region
        $region33: #{tpu_custom_call.1} parent=11 // pred_check
          %p360 = pneg %p178
        $region34: #{tpu_custom_call.1} parent=11 // pred_check_branch
          %362 = sbr.rel (%p360) target = $region36
        $region35: #{tpu_custom_call.1} parent=11 // pred_region
          _
        $region36: #{tpu_custom_call.1} parent=11 // pred_fallthru
          _
        // Predicated region
        $region37: #{tpu_custom_call.1} parent=11 // pred_check
          %p363 = pneg %p199
        $region38: #{tpu_custom_call.1} parent=11 // pred_check_branch
          %365 = sbr.rel (%p363) target = $region40
        $region39: #{tpu_custom_call.1} parent=11 // pred_region
          %367 = vsyncadd [#allocation12], 0
          %s368 = sshll.u32 %s7, 4
          %s369 = int_to_ptr.hbm [resolvable:$true] %s368
          %s370 = sshll.u32 [#allocation11], 4
          %s371 = int_to_ptr.vmem [resolvable:$true] %s370
          %376 = dma.hbm_to_vmem [thread:$0]  %s369, 4096, %s371, [#allocation12], 128, 128, 8
        $region40: #{tpu_custom_call.1} parent=11 // pred_fallthru
          _
        // Predicated region
        $region41: #{tpu_custom_call.1} parent=11 // pred_check
          %p377 = pneg %p220
        $region42: #{tpu_custom_call.1} parent=11 // pred_check_branch
          %379 = sbr.rel (%p377) target = $region44
        $region43: #{tpu_custom_call.1} parent=11 // pred_region
          _
        $region44: #{tpu_custom_call.1} parent=11 // pred_fallthru
          _
        // Predicated region
        $region45: #{tpu_custom_call.1} parent=11 // pred_check
          %p380 = pneg %p241
        $region46: #{tpu_custom_call.1} parent=11 // pred_check_branch
          %382 = sbr.rel (%p380) target = $region48
        $region47: #{tpu_custom_call.1} parent=11 // pred_region
          %384 = vsyncadd [#allocation12], 0
          %s385 = sshll.u32 %s9, 4
          %s386 = int_to_ptr.hbm [resolvable:$true] %s385
          %s387 = sshll.u32 [#allocation13], 4
          %s388 = int_to_ptr.vmem [resolvable:$true] %s387
          %393 = dma.hbm_to_vmem [thread:$0]  %s386, 2048, %s388, [#allocation12], 64, 64, 4
        $region48: #{tpu_custom_call.1} parent=11 // pred_fallthru
          _
        // Predicated region
        $region49: #{tpu_custom_call.1} parent=11 // pred_check
          %p394 = pneg %p262
        $region50: #{tpu_custom_call.1} parent=11 // pred_check_branch
          %396 = sbr.rel (%p394) target = $region52
        $region51: #{tpu_custom_call.1} parent=11 // pred_region
          _
        $region52: #{tpu_custom_call.1} parent=11 // pred_fallthru
          _
      $region12: #{tpu_custom_call.1} parent=5 // pred_fallthru
        _
      %p397 = scmp.lt.s32.totalorder %s26, 2
      // Predicated region
      $region53: #{tpu_custom_call.1} parent=5 // pred_check
        %p398 = pneg %p397
      $region54: #{tpu_custom_call.1} parent=5 // pred_check_branch
        %400 = sbr.rel (%p398) target = $region56
      $region55: #{tpu_custom_call.1} parent=5 // pred_region
        // Predicated region
        $region57: #{tpu_custom_call.1} parent=55 // pred_check
          %p401 = pneg %p46
        $region58: #{tpu_custom_call.1} parent=55 // pred_check_branch
          %403 = sbr.rel (%p401) target = $region60
        $region59: #{tpu_custom_call.1} parent=55 // pred_region
          %s404 = sand.u32 %s36, 1
          %s405 = scalar_lea.sflag [#allocation3], %s404
          %s406 = sand.u32 %s36, 1
          %s407 = smul.addr %s406, 4
          %s408 = scalar_lea.vmem [#allocation2], %s407
          %410 = vsyncadd %s405, 0
          %s411 = smul.addr %s26, 4
          %s412 = scalar_lea.hbm %s0, %s411
          %s414 = sshll.u32 %s412, 4
          %s415 = int_to_ptr.hbm [resolvable:$true] %s414
          %s416 = sshll.u32 %s408, 4
          %s417 = int_to_ptr.vmem [resolvable:$true] %s416
          %419 = dma.hbm_to_vmem [thread:$0]  %s415, 64, %s417, %s405
        $region60: #{tpu_custom_call.1} parent=55 // pred_fallthru
          _
      $region56: #{tpu_custom_call.1} parent=5 // pred_fallthru
        _
      %p420 = scmp.le.s32.totalorder 1, %s26
      %p421 = scmp.lt.s32.totalorder %s26, 3
      %p422 = pnand %p420, %p421
      %p423 = pneg %p422
      // Predicated region
      $region61: #{tpu_custom_call.1} parent=5 // pred_check
        _
      $region62: #{tpu_custom_call.1} parent=5 // pred_check_branch
        %425 = sbr.rel (%p422) target = $region64
      $region63: #{tpu_custom_call.1} parent=5 // pred_region
        %s426 = ssub.s32 %s26, 1
        %s427 = sand.u32 %s39, 1
        %s428 = scalar_lea.sflag [#allocation3], %s427
        %s429 = sand.u32 %s39, 1
        %s430 = smul.addr %s429, 4
        %s431 = scalar_lea.vmem [#allocation2], %s430
        // Predicated region
        $region65: #{tpu_custom_call.1} parent=63 // pred_check
          %p432 = pneg %p52
        $region66: #{tpu_custom_call.1} parent=63 // pred_check_branch
          %434 = sbr.rel (%p432) target = $region68
        $region67: #{tpu_custom_call.1} parent=63 // pred_region
          %436 = dma.done %s428, 64
        $region68: #{tpu_custom_call.1} parent=63 // pred_fallthru
          _
        // Predicated region
        $region69: #{tpu_custom_call.1} parent=63 // pred_check
          %p437 = pneg %p73
        $region70: #{tpu_custom_call.1} parent=63 // pred_check_branch
          %439 = sbr.rel (%p437) target = $region72
        $region71: #{tpu_custom_call.1} parent=63 // pred_region
          %441 = dma.done [#allocation6], 256
        $region72: #{tpu_custom_call.1} parent=63 // pred_fallthru
          _
        // Predicated region
        $region73: #{tpu_custom_call.1} parent=63 // pred_check
          %p442 = pneg %p94
        $region74: #{tpu_custom_call.1} parent=63 // pred_check_branch
          %444 = sbr.rel (%p442) target = $region76
        $region75: #{tpu_custom_call.1} parent=63 // pred_region
          %446 = dma.done [#allocation6], 32
        $region76: #{tpu_custom_call.1} parent=63 // pred_fallthru
          _
        // Predicated region
        $region77: #{tpu_custom_call.1} parent=63 // pred_check
          %p447 = pneg %p115
        $region78: #{tpu_custom_call.1} parent=63 // pred_check_branch
          %449 = sbr.rel (%p447) target = $region80
        $region79: #{tpu_custom_call.1} parent=63 // pred_region
          %451 = dma.done [#allocation9], 4096
        $region80: #{tpu_custom_call.1} parent=63 // pred_fallthru
          _
        // Predicated region
        $region81: #{tpu_custom_call.1} parent=63 // pred_check
          %p452 = pneg %p157
        $region82: #{tpu_custom_call.1} parent=63 // pred_check_branch
          %454 = sbr.rel (%p452) target = $region84
        $region83: #{tpu_custom_call.1} parent=63 // pred_region
          %456 = dma.done [#allocation9], 4096
        $region84: #{tpu_custom_call.1} parent=63 // pred_fallthru
          _
        // Predicated region
        $region85: #{tpu_custom_call.1} parent=63 // pred_check
          %p457 = pneg %p199
        $region86: #{tpu_custom_call.1} parent=63 // pred_check_branch
          %459 = sbr.rel (%p457) target = $region88
        $region87: #{tpu_custom_call.1} parent=63 // pred_region
          %461 = dma.done [#allocation12], 4096
        $region88: #{tpu_custom_call.1} parent=63 // pred_fallthru
          _
        // Predicated region
        $region89: #{tpu_custom_call.1} parent=63 // pred_check
          %p462 = pneg %p241
        $region90: #{tpu_custom_call.1} parent=63 // pred_check_branch
          %464 = sbr.rel (%p462) target = $region92
        $region91: #{tpu_custom_call.1} parent=63 // pred_region
          %466 = dma.done [#allocation12], 2048
        $region92: #{tpu_custom_call.1} parent=63 // pred_fallthru
          _
        %s467 = sand.u32 %s39, 1
        %s468 = scalar_lea.sflag [#allocation3], %s467
        %s469 = sand.u32 %s39, 1
        %s470 = smul.addr %s469, 4
        %s471 = scalar_lea.vmem [#allocation2], %s470
        %p472 = pneg %p52
        %p473 = pneg %p49
        %p474 = pneg %p73
        %p475 = pneg %p70
        %p476 = pneg %p94
        %p477 = pneg %p91
        %p478 = pneg %p115
        %p479 = pneg %p112
        %p480 = pneg %p136
        %p481 = pneg %p133
        %p482 = pneg %p157
        %p483 = pneg %p154
        %p484 = pneg %p178
        %p485 = pneg %p175
        %p486 = pneg %p199
        %p487 = pneg %p196
        %p488 = pneg %p220
        %p489 = pneg %p217
        %p490 = pneg %p241
        %p491 = pneg %p238
        %p492 = pneg %p262
        %p493 = pneg %p259
        %p494 = pneg %p288
        %p495 = pneg %p285
        %s496 = sand.u32 %s275, 1
        %s497 = scalar_lea.sflag [#allocation4], %s496
        %s498 = sand.u32 %s275, 1
        %s499 = smul.addr %s498, 4
        %s500 = scalar_lea.vmem [#allocation14], %s499
        %v502 = vld [vmem:[%s431] sm:$0xf]
        %v503 = vld [vmem:[#allocation5] sm:$0xff]
        %v504 = vld [vmem:[#allocation5 + $0x8] sm:$0xff]
        %v505 = vld [vmem:[#allocation7] sm:$0x3]
        %v507 = vperm.slane %v505, 0
        %v508 = vperm.slane %v505, 1
        %v513 = vunpack.c.l.b16 %v503
        %v514 = vunpack.c.h.b16 %v503
        %v515 = vunpack.c.l.b16 %v504
        %v516 = vunpack.c.h.b16 %v504
        %v517 = vpack.c.b16 %v515, %v513
        %v518 = vpack.c.b16 %v516, %v514
        %vm521 = vcmask 130048
        %v523 = vsel %vm521, %v502, 0
        %525 = vmatpush.bf16.msra.mxu0 0
        %526 = vmatpush.bf16.msra.mxu0 0
        %527 = vmatpush.bf16.msra.mxu0 0
        %528 = vmatpush.bf16.msra.mxu0 0
        %529 = vmatpush.bf16.msra.mxu0 0
        %530 = vmatpush.bf16.msra.mxu0 0
        %531 = vmatpush.bf16.msra.mxu0 0
        %532 = vmatpush.bf16.msra.mxu0 %v517
        %533 = vmatmul.bf16.gmra.mxu0 %v523
        %v534 = vpop.f32.mrf.mxu0
        %v535 = vadd.f32 %v507, %v534
        %v536 = vpop.f32.mrf.mxu0
        %537 = vdwg.mxu0
        %538 = vmatpush.bf16.msra.mxu0 0
        %539 = vmatpush.bf16.msra.mxu0 0
        %540 = vmatpush.bf16.msra.mxu0 0
        %541 = vmatpush.bf16.msra.mxu0 0
        %542 = vmatpush.bf16.msra.mxu0 0
        %543 = vmatpush.bf16.msra.mxu0 0
        %544 = vmatpush.bf16.msra.mxu0 0
        %545 = vmatpush.bf16.msra.mxu0 %v518
        %546 = vmatmul.bf16.gmra.mxu0 %v523
        %v547 = vpop.f32.mrf.mxu0
        %v548 = vadd.f32 %v508, %v547
        %v549 = vpop.f32.mrf.mxu0
        %550 = vdwg.mxu0
        %v551 = vmax.f32 %v535, 0.0
        %v552 = vmax.f32 %v548, 0.0
        %v553 = vpack.c.bf16 %v551, %v551
        %v554 = vpack.c.bf16 %v552, %v552
        %v555 = vld [vmem:[#allocation8] sm:$0xff]
        %v556 = vld [vmem:[#allocation8 + $0x8] sm:$0xff]
        %v557 = vld [vmem:[#allocation8 + $0x10] sm:$0xff]
        %v558 = vld [vmem:[#allocation8 + $0x18] sm:$0xff]
        %v559 = vld [vmem:[#allocation8 + $0x20] sm:$0xff]
        %v560 = vld [vmem:[#allocation8 + $0x28] sm:$0xff]
        %v561 = vld [vmem:[#allocation8 + $0x30] sm:$0xff]
        %v562 = vld [vmem:[#allocation8 + $0x38] sm:$0xff]
        %v563 = vld [vmem:[#allocation8 + $0x40] sm:$0xff]
        %v564 = vld [vmem:[#allocation8 + $0x48] sm:$0xff]
        %v565 = vld [vmem:[#allocation8 + $0x50] sm:$0xff]
        %v566 = vld [vmem:[#allocation8 + $0x58] sm:$0xff]
        %v567 = vld [vmem:[#allocation8 + $0x60] sm:$0xff]
        %v568 = vld [vmem:[#allocation8 + $0x68] sm:$0xff]
        %v569 = vld [vmem:[#allocation8 + $0x70] sm:$0xff]
        %v570 = vld [vmem:[#allocation8 + $0x78] sm:$0xff]
        %v571 = vld [vmem:[#allocation8 + $0x80] sm:$0xff]
        %v572 = vld [vmem:[#allocation8 + $0x88] sm:$0xff]
        %v573 = vld [vmem:[#allocation8 + $0x90] sm:$0xff]
        %v574 = vld [vmem:[#allocation8 + $0x98] sm:$0xff]
        %v575 = vld [vmem:[#allocation8 + $0xa0] sm:$0xff]
        %v576 = vld [vmem:[#allocation8 + $0xa8] sm:$0xff]
        %v577 = vld [vmem:[#allocation8 + $0xb0] sm:$0xff]
        %v578 = vld [vmem:[#allocation8 + $0xb8] sm:$0xff]
        %v579 = vld [vmem:[#allocation8 + $0xc0] sm:$0xff]
        %v580 = vld [vmem:[#allocation8 + $0xc8] sm:$0xff]
        %v581 = vld [vmem:[#allocation8 + $0xd0] sm:$0xff]
        %v582 = vld [vmem:[#allocation8 + $0xd8] sm:$0xff]
        %v583 = vld [vmem:[#allocation8 + $0xe0] sm:$0xff]
        %v584 = vld [vmem:[#allocation8 + $0xe8] sm:$0xff]
        %v585 = vld [vmem:[#allocation8 + $0xf0] sm:$0xff]
        %v586 = vld [vmem:[#allocation8 + $0xf8] sm:$0xff]
        %v587 = vld [vmem:[%s4] sm:$0x3]
        %v589 = vperm.slane %v587, 0
        %v590 = vperm.slane %v587, 1
        %v625 = vunpack.c.l.b16 %v555
        %v626 = vunpack.c.h.b16 %v555
        %v627 = vunpack.c.l.b16 %v556
        %v628 = vunpack.c.h.b16 %v556
        %v629 = vunpack.c.l.b16 %v557
        %v630 = vunpack.c.h.b16 %v557
        %v631 = vunpack.c.l.b16 %v558
        %v632 = vunpack.c.h.b16 %v558
        %v633 = vunpack.c.l.b16 %v559
        %v634 = vunpack.c.h.b16 %v559
        %v635 = vunpack.c.l.b16 %v560
        %v636 = vunpack.c.h.b16 %v560
        %v637 = vunpack.c.l.b16 %v561
        %v638 = vunpack.c.h.b16 %v561
        %v639 = vunpack.c.l.b16 %v562
        %v640 = vunpack.c.h.b16 %v562
        %v641 = vunpack.c.l.b16 %v563
        %v642 = vunpack.c.h.b16 %v563
        %v643 = vunpack.c.l.b16 %v564
        %v644 = vunpack.c.h.b16 %v564
        %v645 = vunpack.c.l.b16 %v565
        %v646 = vunpack.c.h.b16 %v565
        %v647 = vunpack.c.l.b16 %v566
        %v648 = vunpack.c.h.b16 %v566
        %v649 = vunpack.c.l.b16 %v567
        %v650 = vunpack.c.h.b16 %v567
        %v651 = vunpack.c.l.b16 %v568
        %v652 = vunpack.c.h.b16 %v568
        %v653 = vunpack.c.l.b16 %v569
        %v654 = vunpack.c.h.b16 %v569
        %v655 = vunpack.c.l.b16 %v570
        %v656 = vunpack.c.h.b16 %v570
        %v657 = vunpack.c.l.b16 %v571
        %v658 = vunpack.c.h.b16 %v571
        %v659 = vunpack.c.l.b16 %v572
        %v660 = vunpack.c.h.b16 %v572
        %v661 = vunpack.c.l.b16 %v573
        %v662 = vunpack.c.h.b16 %v573
        %v663 = vunpack.c.l.b16 %v574
        %v664 = vunpack.c.h.b16 %v574
        %v665 = vunpack.c.l.b16 %v575
        %v666 = vunpack.c.h.b16 %v575
        %v667 = vunpack.c.l.b16 %v576
        %v668 = vunpack.c.h.b16 %v576
        %v669 = vunpack.c.l.b16 %v577
        %v670 = vunpack.c.h.b16 %v577
        %v671 = vunpack.c.l.b16 %v578
        %v672 = vunpack.c.h.b16 %v578
        %v673 = vunpack.c.l.b16 %v579
        %v674 = vunpack.c.h.b16 %v579
        %v675 = vunpack.c.l.b16 %v580
        %v676 = vunpack.c.h.b16 %v580
        %v677 = vunpack.c.l.b16 %v581
        %v678 = vunpack.c.h.b16 %v581
        %v679 = vunpack.c.l.b16 %v582
        %v680 = vunpack.c.h.b16 %v582
        %v681 = vunpack.c.l.b16 %v583
        %v682 = vunpack.c.h.b16 %v583
        %v683 = vunpack.c.l.b16 %v584
        %v684 = vunpack.c.h.b16 %v584
        %v685 = vunpack.c.l.b16 %v585
        %v686 = vunpack.c.h.b16 %v585
        %v687 = vunpack.c.l.b16 %v586
        %v688 = vunpack.c.h.b16 %v586
        %v689 = vpack.c.b16 %v627, %v625
        %v690 = vpack.c.b16 %v628, %v626
        %v691 = vpack.c.b16 %v631, %v629
        %v692 = vpack.c.b16 %v632, %v630
        %v693 = vpack.c.b16 %v635, %v633
        %v694 = vpack.c.b16 %v636, %v634
        %v695 = vpack.c.b16 %v639, %v637
        %v696 = vpack.c.b16 %v640, %v638
        %v697 = vpack.c.b16 %v643, %v641
        %v698 = vpack.c.b16 %v644, %v642
        %v699 = vpack.c.b16 %v647, %v645
        %v700 = vpack.c.b16 %v648, %v646
        %v701 = vpack.c.b16 %v651, %v649
        %v702 = vpack.c.b16 %v652, %v650
        %v703 = vpack.c.b16 %v655, %v653
        %v704 = vpack.c.b16 %v656, %v654
        %v705 = vpack.c.b16 %v659, %v657
        %v706 = vpack.c.b16 %v660, %v658
        %v707 = vpack.c.b16 %v663, %v661
        %v708 = vpack.c.b16 %v664, %v662
        %v709 = vpack.c.b16 %v667, %v665
        %v710 = vpack.c.b16 %v668, %v666
        %v711 = vpack.c.b16 %v671, %v669
        %v712 = vpack.c.b16 %v672, %v670
        %v713 = vpack.c.b16 %v675, %v673
        %v714 = vpack.c.b16 %v676, %v674
        %v715 = vpack.c.b16 %v679, %v677
        %v716 = vpack.c.b16 %v680, %v678
        %v717 = vpack.c.b16 %v683, %v681
        %v718 = vpack.c.b16 %v684, %v682
        %v719 = vpack.c.b16 %v687, %v685
        %v720 = vpack.c.b16 %v688, %v686
        %753 = vmatpush.bf16.msra.mxu0 %v703
        %754 = vmatpush.bf16.msra.mxu0 %v701
        %755 = vmatpush.bf16.msra.mxu0 %v699
        %756 = vmatpush.bf16.msra.mxu0 %v697
        %757 = vmatpush.bf16.msra.mxu0 %v695
        %758 = vmatpush.bf16.msra.mxu0 %v693
        %759 = vmatpush.bf16.msra.mxu0 %v691
        %760 = vmatpush.bf16.msra.mxu0 %v689
        %761 = vmatmul.bf16.gmra.mxu0 %v553
        %v762 = vpop.f32.mrf.mxu0
        %v763 = vadd.f32 %v589, %v762
        %v764 = vpop.f32.mrf.mxu0
        %765 = vdwg.mxu0
        %766 = vmatpush.bf16.msra.mxu0 %v719
        %767 = vmatpush.bf16.msra.mxu0 %v717
        %768 = vmatpush.bf16.msra.mxu0 %v715
        %769 = vmatpush.bf16.msra.mxu0 %v713
        %770 = vmatpush.bf16.msra.mxu0 %v711
        %771 = vmatpush.bf16.msra.mxu0 %v709
        %772 = vmatpush.bf16.msra.mxu0 %v707
        %773 = vmatpush.bf16.msra.mxu0 %v705
        %774 = vmatmul.bf16.gmra.mxu0 %v554
        %v775 = vpop.f32.mrf.mxu0
        %v776 = vadd.f32 %v763, %v775
        %v777 = vpop.f32.mrf.mxu0
        %778 = vdwg.mxu0
        %779 = vmatpush.bf16.msra.mxu0 %v704
        %780 = vmatpush.bf16.msra.mxu0 %v702
        %781 = vmatpush.bf16.msra.mxu0 %v700
        %782 = vmatpush.bf16.msra.mxu0 %v698
        %783 = vmatpush.bf16.msra.mxu0 %v696
        %784 = vmatpush.bf16.msra.mxu0 %v694
        %785 = vmatpush.bf16.msra.mxu0 %v692
        %786 = vmatpush.bf16.msra.mxu0 %v690
        %787 = vmatmul.bf16.gmra.mxu0 %v553
        %v788 = vpop.f32.mrf.mxu0
        %v789 = vadd.f32 %v590, %v788
        %v790 = vpop.f32.mrf.mxu0
        %791 = vdwg.mxu0
        %792 = vmatpush.bf16.msra.mxu0 %v720
        %793 = vmatpush.bf16.msra.mxu0 %v718
        %794 = vmatpush.bf16.msra.mxu0 %v716
        %795 = vmatpush.bf16.msra.mxu0 %v714
        %796 = vmatpush.bf16.msra.mxu0 %v712
        %797 = vmatpush.bf16.msra.mxu0 %v710
        %798 = vmatpush.bf16.msra.mxu0 %v708
        %799 = vmatpush.bf16.msra.mxu0 %v706
        %800 = vmatmul.bf16.gmra.mxu0 %v554
        %v801 = vpop.f32.mrf.mxu0
        %v802 = vadd.f32 %v789, %v801
        %v803 = vpop.f32.mrf.mxu0
        %804 = vdwg.mxu0
        %v805 = vmax.f32 %v776, 0.0
        %v806 = vmax.f32 %v802, 0.0
        %v807 = vpack.c.bf16 %v805, %v805
        %v808 = vpack.c.bf16 %v806, %v806
        %v809 = vld [vmem:[#allocation10] sm:$0xff]
        %v810 = vld [vmem:[#allocation10 + $0x8] sm:$0xff]
        %v811 = vld [vmem:[#allocation10 + $0x10] sm:$0xff]
        %v812 = vld [vmem:[#allocation10 + $0x18] sm:$0xff]
        %v813 = vld [vmem:[#allocation10 + $0x20] sm:$0xff]
        %v814 = vld [vmem:[#allocation10 + $0x28] sm:$0xff]
        %v815 = vld [vmem:[#allocation10 + $0x30] sm:$0xff]
        %v816 = vld [vmem:[#allocation10 + $0x38] sm:$0xff]
        %v817 = vld [vmem:[#allocation10 + $0x40] sm:$0xff]
        %v818 = vld [vmem:[#allocation10 + $0x48] sm:$0xff]
        %v819 = vld [vmem:[#allocation10 + $0x50] sm:$0xff]
        %v820 = vld [vmem:[#allocation10 + $0x58] sm:$0xff]
        %v821 = vld [vmem:[#allocation10 + $0x60] sm:$0xff]
        %v822 = vld [vmem:[#allocation10 + $0x68] sm:$0xff]
        %v823 = vld [vmem:[#allocation10 + $0x70] sm:$0xff]
        %v824 = vld [vmem:[#allocation10 + $0x78] sm:$0xff]
        %v825 = vld [vmem:[#allocation10 + $0x80] sm:$0xff]
        %v826 = vld [vmem:[#allocation10 + $0x88] sm:$0xff]
        %v827 = vld [vmem:[#allocation10 + $0x90] sm:$0xff]
        %v828 = vld [vmem:[#allocation10 + $0x98] sm:$0xff]
        %v829 = vld [vmem:[#allocation10 + $0xa0] sm:$0xff]
        %v830 = vld [vmem:[#allocation10 + $0xa8] sm:$0xff]
        %v831 = vld [vmem:[#allocation10 + $0xb0] sm:$0xff]
        %v832 = vld [vmem:[#allocation10 + $0xb8] sm:$0xff]
        %v833 = vld [vmem:[#allocation10 + $0xc0] sm:$0xff]
        %v834 = vld [vmem:[#allocation10 + $0xc8] sm:$0xff]
        %v835 = vld [vmem:[#allocation10 + $0xd0] sm:$0xff]
        %v836 = vld [vmem:[#allocation10 + $0xd8] sm:$0xff]
        %v837 = vld [vmem:[#allocation10 + $0xe0] sm:$0xff]
        %v838 = vld [vmem:[#allocation10 + $0xe8] sm:$0xff]
        %v839 = vld [vmem:[#allocation10 + $0xf0] sm:$0xff]
        %v840 = vld [vmem:[#allocation10 + $0xf8] sm:$0xff]
        %v841 = vld [vmem:[%s6] sm:$0x3]
        %v843 = vperm.slane %v841, 0
        %v844 = vperm.slane %v841, 1
        %v879 = vunpack.c.l.b16 %v809
        %v880 = vunpack.c.h.b16 %v809
        %v881 = vunpack.c.l.b16 %v810
        %v882 = vunpack.c.h.b16 %v810
        %v883 = vunpack.c.l.b16 %v811
        %v884 = vunpack.c.h.b16 %v811
        %v885 = vunpack.c.l.b16 %v812
        %v886 = vunpack.c.h.b16 %v812
        %v887 = vunpack.c.l.b16 %v813
        %v888 = vunpack.c.h.b16 %v813
        %v889 = vunpack.c.l.b16 %v814
        %v890 = vunpack.c.h.b16 %v814
        %v891 = vunpack.c.l.b16 %v815
        %v892 = vunpack.c.h.b16 %v815
        %v893 = vunpack.c.l.b16 %v816
        %v894 = vunpack.c.h.b16 %v816
        %v895 = vunpack.c.l.b16 %v817
        %v896 = vunpack.c.h.b16 %v817
        %v897 = vunpack.c.l.b16 %v818
        %v898 = vunpack.c.h.b16 %v818
        %v899 = vunpack.c.l.b16 %v819
        %v900 = vunpack.c.h.b16 %v819
        %v901 = vunpack.c.l.b16 %v820
        %v902 = vunpack.c.h.b16 %v820
        %v903 = vunpack.c.l.b16 %v821
        %v904 = vunpack.c.h.b16 %v821
        %v905 = vunpack.c.l.b16 %v822
        %v906 = vunpack.c.h.b16 %v822
        %v907 = vunpack.c.l.b16 %v823
        %v908 = vunpack.c.h.b16 %v823
        %v909 = vunpack.c.l.b16 %v824
        %v910 = vunpack.c.h.b16 %v824
        %v911 = vunpack.c.l.b16 %v825
        %v912 = vunpack.c.h.b16 %v825
        %v913 = vunpack.c.l.b16 %v826
        %v914 = vunpack.c.h.b16 %v826
        %v915 = vunpack.c.l.b16 %v827
        %v916 = vunpack.c.h.b16 %v827
        %v917 = vunpack.c.l.b16 %v828
        %v918 = vunpack.c.h.b16 %v828
        %v919 = vunpack.c.l.b16 %v829
        %v920 = vunpack.c.h.b16 %v829
        %v921 = vunpack.c.l.b16 %v830
        %v922 = vunpack.c.h.b16 %v830
        %v923 = vunpack.c.l.b16 %v831
        %v924 = vunpack.c.h.b16 %v831
        %v925 = vunpack.c.l.b16 %v832
        %v926 = vunpack.c.h.b16 %v832
        %v927 = vunpack.c.l.b16 %v833
        %v928 = vunpack.c.h.b16 %v833
        %v929 = vunpack.c.l.b16 %v834
        %v930 = vunpack.c.h.b16 %v834
        %v931 = vunpack.c.l.b16 %v835
        %v932 = vunpack.c.h.b16 %v835
        %v933 = vunpack.c.l.b16 %v836
        %v934 = vunpack.c.h.b16 %v836
        %v935 = vunpack.c.l.b16 %v837
        %v936 = vunpack.c.h.b16 %v837
        %v937 = vunpack.c.l.b16 %v838
        %v938 = vunpack.c.h.b16 %v838
        %v939 = vunpack.c.l.b16 %v839
        %v940 = vunpack.c.h.b16 %v839
        %v941 = vunpack.c.l.b16 %v840
        %v942 = vunpack.c.h.b16 %v840
        %v943 = vpack.c.b16 %v881, %v879
        %v944 = vpack.c.b16 %v882, %v880
        %v945 = vpack.c.b16 %v885, %v883
        %v946 = vpack.c.b16 %v886, %v884
        %v947 = vpack.c.b16 %v889, %v887
        %v948 = vpack.c.b16 %v890, %v888
        %v949 = vpack.c.b16 %v893, %v891
        %v950 = vpack.c.b16 %v894, %v892
        %v951 = vpack.c.b16 %v897, %v895
        %v952 = vpack.c.b16 %v898, %v896
        %v953 = vpack.c.b16 %v901, %v899
        %v954 = vpack.c.b16 %v902, %v900
        %v955 = vpack.c.b16 %v905, %v903
        %v956 = vpack.c.b16 %v906, %v904
        %v957 = vpack.c.b16 %v909, %v907
        %v958 = vpack.c.b16 %v910, %v908
        %v959 = vpack.c.b16 %v913, %v911
        %v960 = vpack.c.b16 %v914, %v912
        %v961 = vpack.c.b16 %v917, %v915
        %v962 = vpack.c.b16 %v918, %v916
        %v963 = vpack.c.b16 %v921, %v919
        %v964 = vpack.c.b16 %v922, %v920
        %v965 = vpack.c.b16 %v925, %v923
        %v966 = vpack.c.b16 %v926, %v924
        %v967 = vpack.c.b16 %v929, %v927
        %v968 = vpack.c.b16 %v930, %v928
        %v969 = vpack.c.b16 %v933, %v931
        %v970 = vpack.c.b16 %v934, %v932
        %v971 = vpack.c.b16 %v937, %v935
        %v972 = vpack.c.b16 %v938, %v936
        %v973 = vpack.c.b16 %v941, %v939
        %v974 = vpack.c.b16 %v942, %v940
        %1007 = vmatpush.bf16.msra.mxu0 %v957
        %1008 = vmatpush.bf16.msra.mxu0 %v955
        %1009 = vmatpush.bf16.msra.mxu0 %v953
        %1010 = vmatpush.bf16.msra.mxu0 %v951
        %1011 = vmatpush.bf16.msra.mxu0 %v949
        %1012 = vmatpush.bf16.msra.mxu0 %v947
        %1013 = vmatpush.bf16.msra.mxu0 %v945
        %1014 = vmatpush.bf16.msra.mxu0 %v943
        %1015 = vmatmul.bf16.gmra.mxu0 %v807
        %v1016 = vpop.f32.mrf.mxu0
        %v1017 = vadd.f32 %v843, %v1016
        %v1018 = vpop.f32.mrf.mxu0
        %1019 = vdwg.mxu0
        %1020 = vmatpush.bf16.msra.mxu0 %v973
        %1021 = vmatpush.bf16.msra.mxu0 %v971
        %1022 = vmatpush.bf16.msra.mxu0 %v969
        %1023 = vmatpush.bf16.msra.mxu0 %v967
        %1024 = vmatpush.bf16.msra.mxu0 %v965
        %1025 = vmatpush.bf16.msra.mxu0 %v963
        %1026 = vmatpush.bf16.msra.mxu0 %v961
        %1027 = vmatpush.bf16.msra.mxu0 %v959
        %1028 = vmatmul.bf16.gmra.mxu0 %v808
        %v1029 = vpop.f32.mrf.mxu0
        %v1030 = vadd.f32 %v1017, %v1029
        %v1031 = vpop.f32.mrf.mxu0
        %1032 = vdwg.mxu0
        %1033 = vmatpush.bf16.msra.mxu0 %v958
        %1034 = vmatpush.bf16.msra.mxu0 %v956
        %1035 = vmatpush.bf16.msra.mxu0 %v954
        %1036 = vmatpush.bf16.msra.mxu0 %v952
        %1037 = vmatpush.bf16.msra.mxu0 %v950
        %1038 = vmatpush.bf16.msra.mxu0 %v948
        %1039 = vmatpush.bf16.msra.mxu0 %v946
        %1040 = vmatpush.bf16.msra.mxu0 %v944
        %1041 = vmatmul.bf16.gmra.mxu0 %v807
        %v1042 = vpop.f32.mrf.mxu0
        %v1043 = vadd.f32 %v844, %v1042
        %v1044 = vpop.f32.mrf.mxu0
        %1045 = vdwg.mxu0
        %1046 = vmatpush.bf16.msra.mxu0 %v974
        %1047 = vmatpush.bf16.msra.mxu0 %v972
        %1048 = vmatpush.bf16.msra.mxu0 %v970
        %1049 = vmatpush.bf16.msra.mxu0 %v968
        %1050 = vmatpush.bf16.msra.mxu0 %v966
        %1051 = vmatpush.bf16.msra.mxu0 %v964
        %1052 = vmatpush.bf16.msra.mxu0 %v962
        %1053 = vmatpush.bf16.msra.mxu0 %v960
        %1054 = vmatmul.bf16.gmra.mxu0 %v808
        %v1055 = vpop.f32.mrf.mxu0
        %v1056 = vadd.f32 %v1043, %v1055
        %v1057 = vpop.f32.mrf.mxu0
        %1058 = vdwg.mxu0
        %v1059 = vmax.f32 %v1030, 0.0
        %v1060 = vmax.f32 %v1056, 0.0
        %v1061 = vpack.c.bf16 %v1059, %v1059
        %v1062 = vpack.c.bf16 %v1060, %v1060
        %v1063 = vld [vmem:[#allocation11] sm:$0xff]
        %v1064 = vld [vmem:[#allocation11 + $0x8] sm:$0xff]
        %v1065 = vld [vmem:[#allocation11 + $0x10] sm:$0xff]
        %v1066 = vld [vmem:[#allocation11 + $0x18] sm:$0xff]
        %v1067 = vld [vmem:[#allocation11 + $0x20] sm:$0xff]
        %v1068 = vld [vmem:[#allocation11 + $0x28] sm:$0xff]
        %v1069 = vld [vmem:[#allocation11 + $0x30] sm:$0xff]
        %v1070 = vld [vmem:[#allocation11 + $0x38] sm:$0xff]
        %v1071 = vld [vmem:[#allocation11 + $0x40] sm:$0xff]
        %v1072 = vld [vmem:[#allocation11 + $0x48] sm:$0xff]
        %v1073 = vld [vmem:[#allocation11 + $0x50] sm:$0xff]
        %v1074 = vld [vmem:[#allocation11 + $0x58] sm:$0xff]
        %v1075 = vld [vmem:[#allocation11 + $0x60] sm:$0xff]
        %v1076 = vld [vmem:[#allocation11 + $0x68] sm:$0xff]
        %v1077 = vld [vmem:[#allocation11 + $0x70] sm:$0xff]
        %v1078 = vld [vmem:[#allocation11 + $0x78] sm:$0xff]
        %v1079 = vld [vmem:[#allocation11 + $0x80] sm:$0xff]
        %v1080 = vld [vmem:[#allocation11 + $0x88] sm:$0xff]
        %v1081 = vld [vmem:[#allocation11 + $0x90] sm:$0xff]
        %v1082 = vld [vmem:[#allocation11 + $0x98] sm:$0xff]
        %v1083 = vld [vmem:[#allocation11 + $0xa0] sm:$0xff]
        %v1084 = vld [vmem:[#allocation11 + $0xa8] sm:$0xff]
        %v1085 = vld [vmem:[#allocation11 + $0xb0] sm:$0xff]
        %v1086 = vld [vmem:[#allocation11 + $0xb8] sm:$0xff]
        %v1087 = vld [vmem:[#allocation11 + $0xc0] sm:$0xff]
        %v1088 = vld [vmem:[#allocation11 + $0xc8] sm:$0xff]
        %v1089 = vld [vmem:[#allocation11 + $0xd0] sm:$0xff]
        %v1090 = vld [vmem:[#allocation11 + $0xd8] sm:$0xff]
        %v1091 = vld [vmem:[#allocation11 + $0xe0] sm:$0xff]
        %v1092 = vld [vmem:[#allocation11 + $0xe8] sm:$0xff]
        %v1093 = vld [vmem:[#allocation11 + $0xf0] sm:$0xff]
        %v1094 = vld [vmem:[#allocation11 + $0xf8] sm:$0xff]
        %v1095 = vld [vmem:[%s8] sm:$0x3]
        %v1097 = vperm.slane %v1095, 0
        %v1098 = vperm.slane %v1095, 1
        %v1133 = vunpack.c.l.b16 %v1063
        %v1134 = vunpack.c.h.b16 %v1063
        %v1135 = vunpack.c.l.b16 %v1064
        %v1136 = vunpack.c.h.b16 %v1064
        %v1137 = vunpack.c.l.b16 %v1065
        %v1138 = vunpack.c.h.b16 %v1065
        %v1139 = vunpack.c.l.b16 %v1066
        %v1140 = vunpack.c.h.b16 %v1066
        %v1141 = vunpack.c.l.b16 %v1067
        %v1142 = vunpack.c.h.b16 %v1067
        %v1143 = vunpack.c.l.b16 %v1068
        %v1144 = vunpack.c.h.b16 %v1068
        %v1145 = vunpack.c.l.b16 %v1069
        %v1146 = vunpack.c.h.b16 %v1069
        %v1147 = vunpack.c.l.b16 %v1070
        %v1148 = vunpack.c.h.b16 %v1070
        %v1149 = vunpack.c.l.b16 %v1071
        %v1150 = vunpack.c.h.b16 %v1071
        %v1151 = vunpack.c.l.b16 %v1072
        %v1152 = vunpack.c.h.b16 %v1072
        %v1153 = vunpack.c.l.b16 %v1073
        %v1154 = vunpack.c.h.b16 %v1073
        %v1155 = vunpack.c.l.b16 %v1074
        %v1156 = vunpack.c.h.b16 %v1074
        %v1157 = vunpack.c.l.b16 %v1075
        %v1158 = vunpack.c.h.b16 %v1075
        %v1159 = vunpack.c.l.b16 %v1076
        %v1160 = vunpack.c.h.b16 %v1076
        %v1161 = vunpack.c.l.b16 %v1077
        %v1162 = vunpack.c.h.b16 %v1077
        %v1163 = vunpack.c.l.b16 %v1078
        %v1164 = vunpack.c.h.b16 %v1078
        %v1165 = vunpack.c.l.b16 %v1079
        %v1166 = vunpack.c.h.b16 %v1079
        %v1167 = vunpack.c.l.b16 %v1080
        %v1168 = vunpack.c.h.b16 %v1080
        %v1169 = vunpack.c.l.b16 %v1081
        %v1170 = vunpack.c.h.b16 %v1081
        %v1171 = vunpack.c.l.b16 %v1082
        %v1172 = vunpack.c.h.b16 %v1082
        %v1173 = vunpack.c.l.b16 %v1083
        %v1174 = vunpack.c.h.b16 %v1083
        %v1175 = vunpack.c.l.b16 %v1084
        %v1176 = vunpack.c.h.b16 %v1084
        %v1177 = vunpack.c.l.b16 %v1085
        %v1178 = vunpack.c.h.b16 %v1085
        %v1179 = vunpack.c.l.b16 %v1086
        %v1180 = vunpack.c.h.b16 %v1086
        %v1181 = vunpack.c.l.b16 %v1087
        %v1182 = vunpack.c.h.b16 %v1087
        %v1183 = vunpack.c.l.b16 %v1088
        %v1184 = vunpack.c.h.b16 %v1088
        %v1185 = vunpack.c.l.b16 %v1089
        %v1186 = vunpack.c.h.b16 %v1089
        %v1187 = vunpack.c.l.b16 %v1090
        %v1188 = vunpack.c.h.b16 %v1090
        %v1189 = vunpack.c.l.b16 %v1091
        %v1190 = vunpack.c.h.b16 %v1091
        %v1191 = vunpack.c.l.b16 %v1092
        %v1192 = vunpack.c.h.b16 %v1092
        %v1193 = vunpack.c.l.b16 %v1093
        %v1194 = vunpack.c.h.b16 %v1093
        %v1195 = vunpack.c.l.b16 %v1094
        %v1196 = vunpack.c.h.b16 %v1094
        %v1197 = vpack.c.b16 %v1135, %v1133
        %v1198 = vpack.c.b16 %v1136, %v1134
        %v1199 = vpack.c.b16 %v1139, %v1137
        %v1200 = vpack.c.b16 %v1140, %v1138
        %v1201 = vpack.c.b16 %v1143, %v1141
        %v1202 = vpack.c.b16 %v1144, %v1142
        %v1203 = vpack.c.b16 %v1147, %v1145
        %v1204 = vpack.c.b16 %v1148, %v1146
        %v1205 = vpack.c.b16 %v1151, %v1149
        %v1206 = vpack.c.b16 %v1152, %v1150
        %v1207 = vpack.c.b16 %v1155, %v1153
        %v1208 = vpack.c.b16 %v1156, %v1154
        %v1209 = vpack.c.b16 %v1159, %v1157
        %v1210 = vpack.c.b16 %v1160, %v1158
        %v1211 = vpack.c.b16 %v1163, %v1161
        %v1212 = vpack.c.b16 %v1164, %v1162
        %v1213 = vpack.c.b16 %v1167, %v1165
        %v1214 = vpack.c.b16 %v1168, %v1166
        %v1215 = vpack.c.b16 %v1171, %v1169
        %v1216 = vpack.c.b16 %v1172, %v1170
        %v1217 = vpack.c.b16 %v1175, %v1173
        %v1218 = vpack.c.b16 %v1176, %v1174
        %v1219 = vpack.c.b16 %v1179, %v1177
        %v1220 = vpack.c.b16 %v1180, %v1178
        %v1221 = vpack.c.b16 %v1183, %v1181
        %v1222 = vpack.c.b16 %v1184, %v1182
        %v1223 = vpack.c.b16 %v1187, %v1185
        %v1224 = vpack.c.b16 %v1188, %v1186
        %v1225 = vpack.c.b16 %v1191, %v1189
        %v1226 = vpack.c.b16 %v1192, %v1190
        %v1227 = vpack.c.b16 %v1195, %v1193
        %v1228 = vpack.c.b16 %v1196, %v1194
        %1261 = vmatpush.bf16.msra.mxu0 %v1211
        %1262 = vmatpush.bf16.msra.mxu0 %v1209
        %1263 = vmatpush.bf16.msra.mxu0 %v1207
        %1264 = vmatpush.bf16.msra.mxu0 %v1205
        %1265 = vmatpush.bf16.msra.mxu0 %v1203
        %1266 = vmatpush.bf16.msra.mxu0 %v1201
        %1267 = vmatpush.bf16.msra.mxu0 %v1199
        %1268 = vmatpush.bf16.msra.mxu0 %v1197
        %1269 = vmatmul.bf16.gmra.mxu0 %v1061
        %v1270 = vpop.f32.mrf.mxu0
        %v1271 = vadd.f32 %v1097, %v1270
        %v1272 = vpop.f32.mrf.mxu0
        %1273 = vdwg.mxu0
        %1274 = vmatpush.bf16.msra.mxu0 %v1227
        %1275 = vmatpush.bf16.msra.mxu0 %v1225
        %1276 = vmatpush.bf16.msra.mxu0 %v1223
        %1277 = vmatpush.bf16.msra.mxu0 %v1221
        %1278 = vmatpush.bf16.msra.mxu0 %v1219
        %1279 = vmatpush.bf16.msra.mxu0 %v1217
        %1280 = vmatpush.bf16.msra.mxu0 %v1215
        %1281 = vmatpush.bf16.msra.mxu0 %v1213
        %1282 = vmatmul.bf16.gmra.mxu0 %v1062
        %v1283 = vpop.f32.mrf.mxu0
        %v1284 = vadd.f32 %v1271, %v1283
        %v1285 = vpop.f32.mrf.mxu0
        %1286 = vdwg.mxu0
        %1287 = vmatpush.bf16.msra.mxu0 %v1212
        %1288 = vmatpush.bf16.msra.mxu0 %v1210
        %1289 = vmatpush.bf16.msra.mxu0 %v1208
        %1290 = vmatpush.bf16.msra.mxu0 %v1206
        %1291 = vmatpush.bf16.msra.mxu0 %v1204
        %1292 = vmatpush.bf16.msra.mxu0 %v1202
        %1293 = vmatpush.bf16.msra.mxu0 %v1200
        %1294 = vmatpush.bf16.msra.mxu0 %v1198
        %1295 = vmatmul.bf16.gmra.mxu0 %v1061
        %v1296 = vpop.f32.mrf.mxu0
        %v1297 = vadd.f32 %v1098, %v1296
        %v1298 = vpop.f32.mrf.mxu0
        %1299 = vdwg.mxu0
        %1300 = vmatpush.bf16.msra.mxu0 %v1228
        %1301 = vmatpush.bf16.msra.mxu0 %v1226
        %1302 = vmatpush.bf16.msra.mxu0 %v1224
        %1303 = vmatpush.bf16.msra.mxu0 %v1222
        %1304 = vmatpush.bf16.msra.mxu0 %v1220
        %1305 = vmatpush.bf16.msra.mxu0 %v1218
        %1306 = vmatpush.bf16.msra.mxu0 %v1216
        %1307 = vmatpush.bf16.msra.mxu0 %v1214
        %1308 = vmatmul.bf16.gmra.mxu0 %v1062
        %v1309 = vpop.f32.mrf.mxu0
        %v1310 = vadd.f32 %v1297, %v1309
        %v1311 = vpop.f32.mrf.mxu0
        %1312 = vdwg.mxu0
        %v1313 = vmax.f32 %v1284, 0.0
        %v1314 = vmax.f32 %v1310, 0.0
        %v1315 = vpack.c.bf16 %v1313, %v1313
        %v1316 = vpack.c.bf16 %v1314, %v1314
        %v1317 = vld [vmem:[#allocation13] sm:$0xf]
        %v1318 = vld [vmem:[#allocation13 + $0x4] sm:$0xf]
        %v1319 = vld [vmem:[#allocation13 + $0x8] sm:$0xf]
        %v1320 = vld [vmem:[#allocation13 + $0xc] sm:$0xf]
        %v1321 = vld [vmem:[#allocation13 + $0x10] sm:$0xf]
        %v1322 = vld [vmem:[#allocation13 + $0x14] sm:$0xf]
        %v1323 = vld [vmem:[#allocation13 + $0x18] sm:$0xf]
        %v1324 = vld [vmem:[#allocation13 + $0x1c] sm:$0xf]
        %v1325 = vld [vmem:[#allocation13 + $0x20] sm:$0xf]
        %v1326 = vld [vmem:[#allocation13 + $0x24] sm:$0xf]
        %v1327 = vld [vmem:[#allocation13 + $0x28] sm:$0xf]
        %v1328 = vld [vmem:[#allocation13 + $0x2c] sm:$0xf]
        %v1329 = vld [vmem:[#allocation13 + $0x30] sm:$0xf]
        %v1330 = vld [vmem:[#allocation13 + $0x34] sm:$0xf]
        %v1331 = vld [vmem:[#allocation13 + $0x38] sm:$0xf]
        %v1332 = vld [vmem:[#allocation13 + $0x3c] sm:$0xf]
        %v1333 = vld [vmem:[#allocation13 + $0x40] sm:$0xf]
        %v1334 = vld [vmem:[#allocation13 + $0x44] sm:$0xf]
        %v1335 = vld [vmem:[#allocation13 + $0x48] sm:$0xf]
        %v1336 = vld [vmem:[#allocation13 + $0x4c] sm:$0xf]
        %v1337 = vld [vmem:[#allocation13 + $0x50] sm:$0xf]
        %v1338 = vld [vmem:[#allocation13 + $0x54] sm:$0xf]
        %v1339 = vld [vmem:[#allocation13 + $0x58] sm:$0xf]
        %v1340 = vld [vmem:[#allocation13 + $0x5c] sm:$0xf]
        %v1341 = vld [vmem:[#allocation13 + $0x60] sm:$0xf]
        %v1342 = vld [vmem:[#allocation13 + $0x64] sm:$0xf]
        %v1343 = vld [vmem:[#allocation13 + $0x68] sm:$0xf]
        %v1344 = vld [vmem:[#allocation13 + $0x6c] sm:$0xf]
        %v1345 = vld [vmem:[#allocation13 + $0x70] sm:$0xf]
        %v1346 = vld [vmem:[#allocation13 + $0x74] sm:$0xf]
        %v1347 = vld [vmem:[#allocation13 + $0x78] sm:$0xf]
        %v1348 = vld [vmem:[#allocation13 + $0x7c] sm:$0xf]
        %v1349 = vld [vmem:[%s10] sm:$0x1]
        %v1351 = vperm.slane %v1349, 0
        %v1385 = vunpack.c.l.b16 %v1317
        %v1386 = vunpack.c.l.b16 %v1318
        %v1387 = vunpack.c.l.b16 %v1319
        %v1388 = vunpack.c.l.b16 %v1320
        %v1389 = vunpack.c.l.b16 %v1321
        %v1390 = vunpack.c.l.b16 %v1322
        %v1391 = vunpack.c.l.b16 %v1323
        %v1392 = vunpack.c.l.b16 %v1324
        %v1393 = vunpack.c.l.b16 %v1325
        %v1394 = vunpack.c.l.b16 %v1326
        %v1395 = vunpack.c.l.b16 %v1327
        %v1396 = vunpack.c.l.b16 %v1328
        %v1397 = vunpack.c.l.b16 %v1329
        %v1398 = vunpack.c.l.b16 %v1330
        %v1399 = vunpack.c.l.b16 %v1331
        %v1400 = vunpack.c.l.b16 %v1332
        %v1401 = vunpack.c.l.b16 %v1333
        %v1402 = vunpack.c.l.b16 %v1334
        %v1403 = vunpack.c.l.b16 %v1335
        %v1404 = vunpack.c.l.b16 %v1336
        %v1405 = vunpack.c.l.b16 %v1337
        %v1406 = vunpack.c.l.b16 %v1338
        %v1407 = vunpack.c.l.b16 %v1339
        %v1408 = vunpack.c.l.b16 %v1340
        %v1409 = vunpack.c.l.b16 %v1341
        %v1410 = vunpack.c.l.b16 %v1342
        %v1411 = vunpack.c.l.b16 %v1343
        %v1412 = vunpack.c.l.b16 %v1344
        %v1413 = vunpack.c.l.b16 %v1345
        %v1414 = vunpack.c.l.b16 %v1346
        %v1415 = vunpack.c.l.b16 %v1347
        %v1416 = vunpack.c.l.b16 %v1348
        %v1417 = vpack.c.b16 %v1386, %v1385
        %v1418 = vpack.c.b16 %v1388, %v1387
        %v1419 = vpack.c.b16 %v1390, %v1389
        %v1420 = vpack.c.b16 %v1392, %v1391
        %v1421 = vpack.c.b16 %v1394, %v1393
        %v1422 = vpack.c.b16 %v1396, %v1395
        %v1423 = vpack.c.b16 %v1398, %v1397
        %v1424 = vpack.c.b16 %v1400, %v1399
        %v1425 = vpack.c.b16 %v1402, %v1401
        %v1426 = vpack.c.b16 %v1404, %v1403
        %v1427 = vpack.c.b16 %v1406, %v1405
        %v1428 = vpack.c.b16 %v1408, %v1407
        %v1429 = vpack.c.b16 %v1410, %v1409
        %v1430 = vpack.c.b16 %v1412, %v1411
        %v1431 = vpack.c.b16 %v1414, %v1413
        %v1432 = vpack.c.b16 %v1416, %v1415
        %1449 = vmatpush.bf16.msra.mxu0 %v1424
        %1450 = vmatpush.bf16.msra.mxu0 %v1423
        %1451 = vmatpush.bf16.msra.mxu0 %v1422
        %1452 = vmatpush.bf16.msra.mxu0 %v1421
        %1453 = vmatpush.bf16.msra.mxu0 %v1420
        %1454 = vmatpush.bf16.msra.mxu0 %v1419
        %1455 = vmatpush.bf16.msra.mxu0 %v1418
        %1456 = vmatpush.bf16.msra.mxu0 %v1417
        %1457 = vmatmul.bf16.gmra.mxu0 %v1315
        %v1458 = vpop.f32.mrf.mxu0
        %v1459 = vadd.f32 %v1351, %v1458
        %v1460 = vpop.f32.mrf.mxu0
        %1461 = vdwg.mxu0
        %1462 = vmatpush.bf16.msra.mxu0 %v1432
        %1463 = vmatpush.bf16.msra.mxu0 %v1431
        %1464 = vmatpush.bf16.msra.mxu0 %v1430
        %1465 = vmatpush.bf16.msra.mxu0 %v1429
        %1466 = vmatpush.bf16.msra.mxu0 %v1428
        %1467 = vmatpush.bf16.msra.mxu0 %v1427
        %1468 = vmatpush.bf16.msra.mxu0 %v1426
        %1469 = vmatpush.bf16.msra.mxu0 %v1425
        %1470 = vmatmul.bf16.gmra.mxu0 %v1316
        %v1471 = vpop.f32.mrf.mxu0
        %v1472 = vadd.f32 %v1459, %v1471
        %v1473 = vpop.f32.mrf.mxu0
        %1474 = vdwg.mxu0
        %v1475 = vpack.c.bf16 %v1472, %v1472
        %1476 = vst [vmem:[%s500] sm:$0xf] %v1475
        %s1477 = sand.u32 %s275, 1
        %s1478 = scalar_lea.sflag [#allocation4], %s1477
        %s1479 = sand.u32 %s275, 1
        %s1480 = smul.addr %s1479, 4
        %s1481 = scalar_lea.vmem [#allocation14], %s1480
        // Predicated region
        $region93: #{tpu_custom_call.1} parent=63 // pred_check
          %p1482 = pneg %p285
        $region94: #{tpu_custom_call.1} parent=63 // pred_check_branch
          %1484 = sbr.rel (%p1482) target = $region96
        $region95: #{tpu_custom_call.1} parent=63 // pred_region
          %1486 = vsyncadd %s1478, 0
          %s1487 = smul.addr %s31, 4
          %s1488 = scalar_lea.hbm %s11, %s1487
          %s1490 = sshll.u32 %s1481, 4
          %s1491 = int_to_ptr.vmem [resolvable:$true] %s1490
          %s1492 = sshll.u32 %s1488, 4
          %s1493 = int_to_ptr.hbm [resolvable:$true] %s1492
          %1495 = dma.vmem_to_hbm [thread:$0]  %s1491, 64, %s1493, %s1478
        $region96: #{tpu_custom_call.1} parent=63 // pred_fallthru
          _
      $region64: #{tpu_custom_call.1} parent=5 // pred_fallthru
        _
      %p1496 = scmp.le.s32.totalorder 2, %s26
      // Predicated region
      $region97: #{tpu_custom_call.1} parent=5 // pred_check
        %p1497 = pneg %p1496
      $region98: #{tpu_custom_call.1} parent=5 // pred_check_branch
        %1499 = sbr.rel (%p1497) target = $region100
      $region99: #{tpu_custom_call.1} parent=5 // pred_region
        %s1500 = ssub.s32 %s26, 2
        // Predicated region
        $region101: #{tpu_custom_call.1} parent=99 // pred_check
          %p1501 = pneg %p291
        $region102: #{tpu_custom_call.1} parent=99 // pred_check_branch
          %1503 = sbr.rel (%p1501) target = $region104
        $region103: #{tpu_custom_call.1} parent=99 // pred_region
          %s1504 = sand.u32 %s276, 1
          %s1505 = scalar_lea.sflag [#allocation4], %s1504
          %s1506 = sand.u32 %s276, 1
          %s1507 = smul.addr %s1506, 4
          %s1508 = scalar_lea.vmem [#allocation14], %s1507
          %1510 = dma.done %s1505, 64
        $region104: #{tpu_custom_call.1} parent=99 // pred_fallthru
          _
      $region100: #{tpu_custom_call.1} parent=5 // pred_fallthru
        _
    $region6: #{tpu_custom_call.1} parent=1 // loop_footer
      %s30 = sadd.s32 1, %s26
    $region7: #{tpu_custom_call.1} parent=1 // loop_footer_branch
      %25 = sbr.rel target = $region3
    $region8: #{tpu_custom_call.1} parent=1 // loop_exit
      _
    %1511 = vsyncpa [#allocation3], 1
    %s1512 = scalar_lea.sflag [#allocation3], 1
    %1513 = vsyncpa %s1512, 1
    %1514 = vsyncpa [#allocation6], 1
    %1515 = vsyncpa [#allocation9], 1
    %1516 = vsyncpa [#allocation12], 1
    %1517 = vsyncpa [#allocation4], 1
    %s1518 = scalar_lea.sflag [#allocation4], 1
    %1519 = vsyncpa %s1518, 1

</llo_original>
